<compile_context>
chip_gen: v7x
topology: tpu7x:2x2x1
jax: 0.10.0
libtpu: 0.0.40
codegen_flags: <defaults>
</compile_context>

<pallas_src>
import jax
import jax.numpy as jnp
from jax import lax
from jax.experimental import pallas as pl
from jax.experimental.pallas import tpu as pltpu
import numpy as np

HIDDEN_SIZE = 50
INPUT_SIZES = [6, 3, 3]
TRAIN_SETTING = 0
INPUT_SIZE = INPUT_SIZES[TRAIN_SETTING]
OUTPUT_SIZE = 3
HP = 128  # lane-aligned padded hidden / gate-slab width


# ----------------------------- Pallas kernel --------------------------------
def gru_fused_kernel(x_ref, wx_ref, wh_ref, bx_ref, bhn_ref, wl_ref, bl_ref,
                     out_ref):
    """Whole-sequence GRU + output projection in one invocation.

    x_ref  : (B, T, I)     full input sequence
    wx_ref : (I, 3*HP)     fused input weights, gate slabs [r | z | n], each
                           128 lanes wide (cols >= H zero)
    wh_ref : (HP, 3*HP)    fused hidden weights (rows >= H zero, padded cols 0)
    bx_ref : (1, 3*HP)     fused biases [b_ir+b_hr | b_iz+b_hz | b_in], padded
    bhn_ref: (1, HP)       hidden-side n-gate bias (kept split: scaled by r)
    wl_ref : (HP, O), bl_ref: (1, O)  output projection (rows >= H zero)
    out_ref: (B, T, O)     full output sequence
    """
    B, T, I = x_ref.shape
    O = wl_ref.shape[1]

    x = x_ref[...]                       # (B, T, I)
    wx = wx_ref[...]                     # (I, 3*HP)
    wh = wh_ref[...]                     # (HP, 3*HP)
    bx = bx_ref[...]                     # (1, 3*HP)
    wl = wl_ref[...]                     # (HP, O)
    bl = bl_ref[...]                     # (1, O)

    # Hoisted input projection: one matmul over all B*T rows, bias folded in.
    xw = jnp.dot(x.reshape(B * T, I), wx,
                 preferred_element_type=jnp.float32) + bx      # (B*T, 3*HP)
    xw = xw.reshape(B, T, 3 * HP)

    # Hoist the b_hn broadcast out of the unrolled recurrence.
    bhn = jnp.broadcast_to(bhn_ref[...], (B, HP))

    h = jnp.zeros((B, HP), jnp.float32)  # padded cols stay exactly 0
    hs = []
    for t in range(T):                   # T is small & static: fully unrolled
        xw_t = xw[:, t, :]                                        # (B, 3*HP)
        hw = jnp.dot(h, wh, preferred_element_type=jnp.float32)   # (B, 3*HP)
        # All gate slices start at lane-tile aligned offsets 0/128/256.
        r = jax.nn.sigmoid(xw_t[:, :HP] + hw[:, :HP])
        z = jax.nn.sigmoid(xw_t[:, HP:2 * HP] + hw[:, HP:2 * HP])
        n = jnp.tanh(xw_t[:, 2 * HP:] + r * (hw[:, 2 * HP:] + bhn))
        h = n + z * (h - n)              # == (1 - z) * n + z * h
        hs.append(h)

    # Hoisted output projection: one (B*T, HP) @ (HP, O) matmul, single store.
    h_all = jnp.stack(hs, axis=1)                                 # (B, T, HP)
    out = jnp.dot(h_all.reshape(B * T, HP), wl,
                  preferred_element_type=jnp.float32) + bl        # (B*T, O)
    out_ref[...] = out.reshape(B, T, O)


# ------------------------------- wrapper -------------------------------------
def simple_gru_pallas(x, kparams):
    """x: (B, T, I) float32 -> (B, T, O) float32."""
    B, T, I = x.shape
    O = kparams["wl"].shape[1]

    operands = (x, kparams["wx_cat"], kparams["wh_cat"], kparams["bx_cat"],
                kparams["bhn"], kparams["wl"], kparams["bl"])

    # Whole problem (x + padded weights + outputs ~ few hundred KB) fits in
    # VMEM: single invocation, full arrays resident, no grid bookkeeping.
    return pl.pallas_call(
        gru_fused_kernel,
        out_shape=jax.ShapeDtypeStruct((B, T, O), jnp.float32),
        in_specs=[pl.BlockSpec(memory_space=pltpu.MemorySpace.VMEM)]
                 * len(operands),
        out_specs=pl.BlockSpec(memory_space=pltpu.MemorySpace.VMEM),
    )(*operands)


# ----------------------- deterministic parameter init ------------------------
def init_params(key, input_size, hidden_size, output_size):
    """Returns (raw_params for the reference, padded kernel params)."""
    ks = jax.random.split(key, 6)
    H = hidden_size
    kH = 1.0 / np.sqrt(hidden_size)

    # PyTorch GRU parameter shapes (gate order r, z, n).
    w_ih = jax.random.uniform(ks[0], (3 * H, input_size), jnp.float32, -kH, kH)
    w_hh = jax.random.uniform(ks[1], (3 * H, H), jnp.float32, -kH, kH)
    b_ih = jax.random.uniform(ks[2], (3 * H,), jnp.float32, -kH, kH)
    b_hh = jax.random.uniform(ks[3], (3 * H,), jnp.float32, -kH, kH)

    kL = 1.0 / np.sqrt(hidden_size)
    w_lin = jax.random.uniform(ks[4], (output_size, H), jnp.float32, -kL, kL)
    b_lin = jax.random.uniform(ks[5], (output_size,), jnp.float32, -kL, kL)

    raw = dict(w_ih=w_ih, w_hh=w_hh, b_ih=b_ih, b_hh=b_hh,
               w_lin=w_lin, b_lin=b_lin)

    # ---- build padded, fused, transposed kernel params (done once, host side)
    def pad_cols(w, width):
        return jnp.pad(w, ((0, 0), (0, width - w.shape[1])))

    def pad_vec(v, width):
        return jnp.pad(v, (0, width - v.shape[0]))

    wxT = w_ih.T                                   # (I, 3H), gates [r|z|n]
    wx_cat = jnp.concatenate(
        [pad_cols(wxT[:, g * H:(g + 1) * H], HP) for g in range(3)], axis=1)

    whT = jnp.pad(w_hh.T, ((0, HP - H), (0, 0)))   # (HP, 3H), padded rows = 0
    wh_cat = jnp.concatenate(
        [pad_cols(whT[:, g * H:(g + 1) * H], HP) for g in range(3)], axis=1)

    # r/z gates: input and hidden biases collapse; n-gate hidden bias stays
    # split because it is scaled by r inside tanh. Padded entries are 0.
    bx_cat = jnp.concatenate([
        pad_vec(b_ih[0 * H:1 * H] + b_hh[0 * H:1 * H], HP),
        pad_vec(b_ih[1 * H:2 * H] + b_hh[1 * H:2 * H], HP),
        pad_vec(b_ih[2 * H:3 * H], HP),
    ]).reshape(1, 3 * HP)

    kern = {
        "wx_cat": wx_cat,                                   # (I, 3*HP)
        "wh_cat": wh_cat,                                   # (HP, 3*HP)
        "bx_cat": bx_cat,                                   # (1, 3*HP)
        "bhn": pad_vec(b_hh[2 * H:3 * H], HP).reshape(1, HP),  # (1, HP)
        "wl": jnp.pad(w_lin.T, ((0, HP - H), (0, 0))),      # (HP, O)
        "bl": b_lin.reshape(1, output_size),                # (1, O)
    }
    return raw, kern


# ------------------------- pure-JAX reference (check) ------------------------
def simple_gru_ref(x, raw):
    """Straight GRU math from the unpadded PyTorch-shaped parameters."""
    B, T, I = x.shape
    H = raw["w_hh"].shape[1]
    wx = raw["w_ih"].T                   # (I, 3H)
    wh = raw["w_hh"].T                   # (H, 3H)
    b_ih, b_hh = raw["b_ih"], raw["b_hh"]

    def step(h, x_t):
        xw = x_t @ wx + b_ih
        hw = h @ wh + b_hh
        r = jax.nn.sigmoid(xw[:, :H] + hw[:, :H])
        z = jax.nn.sigmoid(xw[:, H:2 * H] + hw[:, H:2 * H])
        n = jnp.tanh(xw[:, 2 * H:] + r * hw[:, 2 * H:])
        h_new = (1.0 - z) * n + z * h
        return h_new, h_new @ raw["w_lin"].T + raw["b_lin"]

    h0 = jnp.zeros((B, H), jnp.float32)
    _, ys = lax.scan(step, h0, jnp.transpose(x, (1, 0, 2)))
    return jnp.transpose(ys, (1, 0, 2))


if __name__ == "__main__":
    key = jax.random.PRNGKey(0)
    k_param, k_x = jax.random.split(key)

    B, T = 2, 8
    raw_params, kern_params = init_params(k_param, INPUT_SIZE, HIDDEN_SIZE,
                                          OUTPUT_SIZE)
    x = jax.random.normal(k_x, (B, T, INPUT_SIZE), jnp.float32)

    out = jax.block_until_ready(simple_gru_pallas(x, kern_params))
    ref = jax.block_until_ready(simple_gru_ref(x, raw_params))

    np.testing.assert_allclose(np.asarray(out), np.asarray(ref),
                               rtol=1e-5, atol=1e-5)
    assert out.shape == (B, T, OUTPUT_SIZE)
    print("KERNEL_OK")
</pallas_src>

<mosaic_0001>
module attributes {stable_mosaic.version = 11 : i64} {
  func.func @gru_fused_kernel(%arg0: memref<2x8x6xf32, #tpu.memory_space<vmem>>, %arg1: memref<6x384xf32, #tpu.memory_space<vmem>>, %arg2: memref<128x384xf32, #tpu.memory_space<vmem>>, %arg3: memref<1x384xf32, #tpu.memory_space<vmem>>, %arg4: memref<1x128xf32, #tpu.memory_space<vmem>>, %arg5: memref<128x3xf32, #tpu.memory_space<vmem>>, %arg6: memref<1x3xf32, #tpu.memory_space<vmem>>, %arg7: memref<2x8x3xf32, #tpu.memory_space<vmem>>) attributes {dimension_semantics = [], scalar_prefetch = 0 : i64, scratch_operands = 0 : i64, tpu.core_type = #tpu.core_type<tc>} {
    %c0 = arith.constant 0 : index
    %c0_0 = arith.constant 0 : index
    %c0_1 = arith.constant 0 : index
    %0 = vector.load %arg0[%c0, %c0_0, %c0_1] : memref<2x8x6xf32, #tpu.memory_space<vmem>>, vector<2x8x6xf32>
    %c0_2 = arith.constant 0 : index
    %c0_3 = arith.constant 0 : index
    %1 = vector.load %arg1[%c0_2, %c0_3] : memref<6x384xf32, #tpu.memory_space<vmem>>, vector<6x384xf32>
    %c0_4 = arith.constant 0 : index
    %c0_5 = arith.constant 0 : index
    %2 = vector.load %arg2[%c0_4, %c0_5] : memref<128x384xf32, #tpu.memory_space<vmem>>, vector<128x384xf32>
    %c0_6 = arith.constant 0 : index
    %c0_7 = arith.constant 0 : index
    %3 = vector.load %arg3[%c0_6, %c0_7] : memref<1x384xf32, #tpu.memory_space<vmem>>, vector<1x384xf32>
    %c0_8 = arith.constant 0 : index
    %c0_9 = arith.constant 0 : index
    %4 = vector.load %arg5[%c0_8, %c0_9] : memref<128x3xf32, #tpu.memory_space<vmem>>, vector<128x3xf32>
    %c0_10 = arith.constant 0 : index
    %c0_11 = arith.constant 0 : index
    %5 = vector.load %arg6[%c0_10, %c0_11] : memref<1x3xf32, #tpu.memory_space<vmem>>, vector<1x3xf32>
    %6 = vector.shape_cast %0 : vector<2x8x6xf32> to vector<16x6xf32>
    %cst = arith.constant dense<0.000000e+00> : vector<16x384xf32>
    %7 = tpu.matmul %6, %1, %cst {dimension_numbers = #tpu.dot_dimension_numbers<[1], [0], [0], [1], [0, 0, 1, 1], [], []>} : vector<16x6xf32>, vector<6x384xf32>, vector<16x384xf32> -> vector<16x384xf32>
    %8 = vector.broadcast %3 : vector<1x384xf32> to vector<16x384xf32>
    %9 = arith.addf %7, %8 : vector<16x384xf32>
    %10 = vector.shape_cast %9 : vector<16x384xf32> to vector<2x8x384xf32>
    %c0_12 = arith.constant 0 : index
    %c0_13 = arith.constant 0 : index
    %11 = vector.load %arg4[%c0_12, %c0_13] : memref<1x128xf32, #tpu.memory_space<vmem>>, vector<1x128xf32>
    %12 = vector.shape_cast %11 : vector<1x128xf32> to vector<1x128xf32>
    %13 = vector.broadcast %12 : vector<1x128xf32> to vector<2x128xf32>
    %cst_14 = arith.constant 0.000000e+00 : f32
    %14 = vector.broadcast %cst_14 : f32 to vector<2x128xf32>
    %15 = vector.extract_strided_slice %10 {offsets = [0, 0, 0], sizes = [2, 1, 384], strides = [1, 1, 1]} : vector<2x8x384xf32> to vector<2x1x384xf32>
    %16 = vector.shape_cast %15 : vector<2x1x384xf32> to vector<2x384xf32>
    %cst_15 = arith.constant dense<0.000000e+00> : vector<2x384xf32>
    %17 = tpu.matmul %14, %2, %cst_15 {dimension_numbers = #tpu.dot_dimension_numbers<[1], [0], [0], [1], [0, 0, 1, 1], [], []>} : vector<2x128xf32>, vector<128x384xf32>, vector<2x384xf32> -> vector<2x384xf32>
    %18 = vector.extract_strided_slice %16 {offsets = [0, 0], sizes = [2, 128], strides = [1, 1]} : vector<2x384xf32> to vector<2x128xf32>
    %19 = vector.extract_strided_slice %17 {offsets = [0, 0], sizes = [2, 128], strides = [1, 1]} : vector<2x384xf32> to vector<2x128xf32>
    %20 = arith.addf %18, %19 : vector<2x128xf32>
    %21 = arith.negf %20 : vector<2x128xf32>
    %22 = math.exp %21 : vector<2x128xf32>
    %cst_16 = arith.constant 1.000000e+00 : f32
    %23 = vector.broadcast %cst_16 : f32 to vector<2x128xf32>
    %24 = arith.addf %23, %22 : vector<2x128xf32>
    %25 = arith.divf %23, %24 : vector<2x128xf32>
    %26 = vector.extract_strided_slice %16 {offsets = [0, 128], sizes = [2, 128], strides = [1, 1]} : vector<2x384xf32> to vector<2x128xf32>
    %27 = vector.extract_strided_slice %17 {offsets = [0, 128], sizes = [2, 128], strides = [1, 1]} : vector<2x384xf32> to vector<2x128xf32>
    %28 = arith.addf %26, %27 : vector<2x128xf32>
    %29 = arith.negf %28 : vector<2x128xf32>
    %30 = math.exp %29 : vector<2x128xf32>
    %cst_17 = arith.constant 1.000000e+00 : f32
    %31 = vector.broadcast %cst_17 : f32 to vector<2x128xf32>
    %32 = arith.addf %31, %30 : vector<2x128xf32>
    %33 = arith.divf %31, %32 : vector<2x128xf32>
    %34 = vector.extract_strided_slice %16 {offsets = [0, 256], sizes = [2, 128], strides = [1, 1]} : vector<2x384xf32> to vector<2x128xf32>
    %35 = vector.extract_strided_slice %17 {offsets = [0, 256], sizes = [2, 128], strides = [1, 1]} : vector<2x384xf32> to vector<2x128xf32>
    %36 = arith.addf %35, %13 : vector<2x128xf32>
    %37 = arith.mulf %25, %36 : vector<2x128xf32>
    %38 = arith.addf %34, %37 : vector<2x128xf32>
    %39 = math.tanh %38 : vector<2x128xf32>
    %40 = arith.subf %14, %39 : vector<2x128xf32>
    %41 = arith.mulf %33, %40 : vector<2x128xf32>
    %42 = arith.addf %39, %41 : vector<2x128xf32>
    %43 = vector.extract_strided_slice %10 {offsets = [0, 1, 0], sizes = [2, 1, 384], strides = [1, 1, 1]} : vector<2x8x384xf32> to vector<2x1x384xf32>
    %44 = vector.shape_cast %43 : vector<2x1x384xf32> to vector<2x384xf32>
    %cst_18 = arith.constant dense<0.000000e+00> : vector<2x384xf32>
    %45 = tpu.matmul %42, %2, %cst_18 {dimension_numbers = #tpu.dot_dimension_numbers<[1], [0], [0], [1], [0, 0, 1, 1], [], []>} : vector<2x128xf32>, vector<128x384xf32>, vector<2x384xf32> -> vector<2x384xf32>
    %46 = vector.extract_strided_slice %44 {offsets = [0, 0], sizes = [2, 128], strides = [1, 1]} : vector<2x384xf32> to vector<2x128xf32>
    %47 = vector.extract_strided_slice %45 {offsets = [0, 0], sizes = [2, 128], strides = [1, 1]} : vector<2x384xf32> to vector<2x128xf32>
    %48 = arith.addf %46, %47 : vector<2x128xf32>
    %49 = arith.negf %48 : vector<2x128xf32>
    %50 = math.exp %49 : vector<2x128xf32>
    %cst_19 = arith.constant 1.000000e+00 : f32
    %51 = vector.broadcast %cst_19 : f32 to vector<2x128xf32>
    %52 = arith.addf %51, %50 : vector<2x128xf32>
    %53 = arith.divf %51, %52 : vector<2x128xf32>
    %54 = vector.extract_strided_slice %44 {offsets = [0, 128], sizes = [2, 128], strides = [1, 1]} : vector<2x384xf32> to vector<2x128xf32>
    %55 = vector.extract_strided_slice %45 {offsets = [0, 128], sizes = [2, 128], strides = [1, 1]} : vector<2x384xf32> to vector<2x128xf32>
    %56 = arith.addf %54, %55 : vector<2x128xf32>
    %57 = arith.negf %56 : vector<2x128xf32>
    %58 = math.exp %57 : vector<2x128xf32>
    %cst_20 = arith.constant 1.000000e+00 : f32
    %59 = vector.broadcast %cst_20 : f32 to vector<2x128xf32>
    %60 = arith.addf %59, %58 : vector<2x128xf32>
    %61 = arith.divf %59, %60 : vector<2x128xf32>
    %62 = vector.extract_strided_slice %44 {offsets = [0, 256], sizes = [2, 128], strides = [1, 1]} : vector<2x384xf32> to vector<2x128xf32>
    %63 = vector.extract_strided_slice %45 {offsets = [0, 256], sizes = [2, 128], strides = [1, 1]} : vector<2x384xf32> to vector<2x128xf32>
    %64 = arith.addf %63, %13 : vector<2x128xf32>
    %65 = arith.mulf %53, %64 : vector<2x128xf32>
    %66 = arith.addf %62, %65 : vector<2x128xf32>
    %67 = math.tanh %66 : vector<2x128xf32>
    %68 = arith.subf %42, %67 : vector<2x128xf32>
    %69 = arith.mulf %61, %68 : vector<2x128xf32>
    %70 = arith.addf %67, %69 : vector<2x128xf32>
    %71 = vector.extract_strided_slice %10 {offsets = [0, 2, 0], sizes = [2, 1, 384], strides = [1, 1, 1]} : vector<2x8x384xf32> to vector<2x1x384xf32>
    %72 = vector.shape_cast %71 : vector<2x1x384xf32> to vector<2x384xf32>
    %cst_21 = arith.constant dense<0.000000e+00> : vector<2x384xf32>
    %73 = tpu.matmul %70, %2, %cst_21 {dimension_numbers = #tpu.dot_dimension_numbers<[1], [0], [0], [1], [0, 0, 1, 1], [], []>} : vector<2x128xf32>, vector<128x384xf32>, vector<2x384xf32> -> vector<2x384xf32>
    %74 = vector.extract_strided_slice %72 {offsets = [0, 0], sizes = [2, 128], strides = [1, 1]} : vector<2x384xf32> to vector<2x128xf32>
    %75 = vector.extract_strided_slice %73 {offsets = [0, 0], sizes = [2, 128], strides = [1, 1]} : vector<2x384xf32> to vector<2x128xf32>
    %76 = arith.addf %74, %75 : vector<2x128xf32>
    %77 = arith.negf %76 : vector<2x128xf32>
    %78 = math.exp %77 : vector<2x128xf32>
    %cst_22 = arith.constant 1.000000e+00 : f32
    %79 = vector.broadcast %cst_22 : f32 to vector<2x128xf32>
    %80 = arith.addf %79, %78 : vector<2x128xf32>
    %81 = arith.divf %79, %80 : vector<2x128xf32>
    %82 = vector.extract_strided_slice %72 {offsets = [0, 128], sizes = [2, 128], strides = [1, 1]} : vector<2x384xf32> to vector<2x128xf32>
    %83 = vector.extract_strided_slice %73 {offsets = [0, 128], sizes = [2, 128], strides = [1, 1]} : vector<2x384xf32> to vector<2x128xf32>
    %84 = arith.addf %82, %83 : vector<2x128xf32>
    %85 = arith.negf %84 : vector<2x128xf32>
    %86 = math.exp %85 : vector<2x128xf32>
    %cst_23 = arith.constant 1.000000e+00 : f32
    %87 = vector.broadcast %cst_23 : f32 to vector<2x128xf32>
    %88 = arith.addf %87, %86 : vector<2x128xf32>
    %89 = arith.divf %87, %88 : vector<2x128xf32>
    %90 = vector.extract_strided_slice %72 {offsets = [0, 256], sizes = [2, 128], strides = [1, 1]} : vector<2x384xf32> to vector<2x128xf32>
    %91 = vector.extract_strided_slice %73 {offsets = [0, 256], sizes = [2, 128], strides = [1, 1]} : vector<2x384xf32> to vector<2x128xf32>
    %92 = arith.addf %91, %13 : vector<2x128xf32>
    %93 = arith.mulf %81, %92 : vector<2x128xf32>
    %94 = arith.addf %90, %93 : vector<2x128xf32>
    %95 = math.tanh %94 : vector<2x128xf32>
    %96 = arith.subf %70, %95 : vector<2x128xf32>
    %97 = arith.mulf %89, %96 : vector<2x128xf32>
    %98 = arith.addf %95, %97 : vector<2x128xf32>
    %99 = vector.extract_strided_slice %10 {offsets = [0, 3, 0], sizes = [2, 1, 384], strides = [1, 1, 1]} : vector<2x8x384xf32> to vector<2x1x384xf32>
    %100 = vector.shape_cast %99 : vector<2x1x384xf32> to vector<2x384xf32>
    %cst_24 = arith.constant dense<0.000000e+00> : vector<2x384xf32>
    %101 = tpu.matmul %98, %2, %cst_24 {dimension_numbers = #tpu.dot_dimension_numbers<[1], [0], [0], [1], [0, 0, 1, 1], [], []>} : vector<2x128xf32>, vector<128x384xf32>, vector<2x384xf32> -> vector<2x384xf32>
    %102 = vector.extract_strided_slice %100 {offsets = [0, 0], sizes = [2, 128], strides = [1, 1]} : vector<2x384xf32> to vector<2x128xf32>
    %103 = vector.extract_strided_slice %101 {offsets = [0, 0], sizes = [2, 128], strides = [1, 1]} : vector<2x384xf32> to vector<2x128xf32>
    %104 = arith.addf %102, %103 : vector<2x128xf32>
    %105 = arith.negf %104 : vector<2x128xf32>
    %106 = math.exp %105 : vector<2x128xf32>
    %cst_25 = arith.constant 1.000000e+00 : f32
    %107 = vector.broadcast %cst_25 : f32 to vector<2x128xf32>
    %108 = arith.addf %107, %106 : vector<2x128xf32>
    %109 = arith.divf %107, %108 : vector<2x128xf32>
    %110 = vector.extract_strided_slice %100 {offsets = [0, 128], sizes = [2, 128], strides = [1, 1]} : vector<2x384xf32> to vector<2x128xf32>
    %111 = vector.extract_strided_slice %101 {offsets = [0, 128], sizes = [2, 128], strides = [1, 1]} : vector<2x384xf32> to vector<2x128xf32>
    %112 = arith.addf %110, %111 : vector<2x128xf32>
    %113 = arith.negf %112 : vector<2x128xf32>
    %114 = math.exp %113 : vector<2x128xf32>
    %cst_26 = arith.constant 1.000000e+00 : f32
    %115 = vector.broadcast %cst_26 : f32 to vector<2x128xf32>
    %116 = arith.addf %115, %114 : vector<2x128xf32>
    %117 = arith.divf %115, %116 : vector<2x128xf32>
    %118 = vector.extract_strided_slice %100 {offsets = [0, 256], sizes = [2, 128], strides = [1, 1]} : vector<2x384xf32> to vector<2x128xf32>
    %119 = vector.extract_strided_slice %101 {offsets = [0, 256], sizes = [2, 128], strides = [1, 1]} : vector<2x384xf32> to vector<2x128xf32>
    %120 = arith.addf %119, %13 : vector<2x128xf32>
    %121 = arith.mulf %109, %120 : vector<2x128xf32>
    %122 = arith.addf %118, %121 : vector<2x128xf32>
    %123 = math.tanh %122 : vector<2x128xf32>
    %124 = arith.subf %98, %123 : vector<2x128xf32>
    %125 = arith.mulf %117, %124 : vector<2x128xf32>
    %126 = arith.addf %123, %125 : vector<2x128xf32>
    %127 = vector.extract_strided_slice %10 {offsets = [0, 4, 0], sizes = [2, 1, 384], strides = [1, 1, 1]} : vector<2x8x384xf32> to vector<2x1x384xf32>
    %128 = vector.shape_cast %127 : vector<2x1x384xf32> to vector<2x384xf32>
    %cst_27 = arith.constant dense<0.000000e+00> : vector<2x384xf32>
    %129 = tpu.matmul %126, %2, %cst_27 {dimension_numbers = #tpu.dot_dimension_numbers<[1], [0], [0], [1], [0, 0, 1, 1], [], []>} : vector<2x128xf32>, vector<128x384xf32>, vector<2x384xf32> -> vector<2x384xf32>
    %130 = vector.extract_strided_slice %128 {offsets = [0, 0], sizes = [2, 128], strides = [1, 1]} : vector<2x384xf32> to vector<2x128xf32>
    %131 = vector.extract_strided_slice %129 {offsets = [0, 0], sizes = [2, 128], strides = [1, 1]} : vector<2x384xf32> to vector<2x128xf32>
    %132 = arith.addf %130, %131 : vector<2x128xf32>
    %133 = arith.negf %132 : vector<2x128xf32>
    %134 = math.exp %133 : vector<2x128xf32>
    %cst_28 = arith.constant 1.000000e+00 : f32
    %135 = vector.broadcast %cst_28 : f32 to vector<2x128xf32>
    %136 = arith.addf %135, %134 : vector<2x128xf32>
    %137 = arith.divf %135, %136 : vector<2x128xf32>
    %138 = vector.extract_strided_slice %128 {offsets = [0, 128], sizes = [2, 128], strides = [1, 1]} : vector<2x384xf32> to vector<2x128xf32>
    %139 = vector.extract_strided_slice %129 {offsets = [0, 128], sizes = [2, 128], strides = [1, 1]} : vector<2x384xf32> to vector<2x128xf32>
    %140 = arith.addf %138, %139 : vector<2x128xf32>
    %141 = arith.negf %140 : vector<2x128xf32>
    %142 = math.exp %141 : vector<2x128xf32>
    %cst_29 = arith.constant 1.000000e+00 : f32
    %143 = vector.broadcast %cst_29 : f32 to vector<2x128xf32>
    %144 = arith.addf %143, %142 : vector<2x128xf32>
    %145 = arith.divf %143, %144 : vector<2x128xf32>
    %146 = vector.extract_strided_slice %128 {offsets = [0, 256], sizes = [2, 128], strides = [1, 1]} : vector<2x384xf32> to vector<2x128xf32>
    %147 = vector.extract_strided_slice %129 {offsets = [0, 256], sizes = [2, 128], strides = [1, 1]} : vector<2x384xf32> to vector<2x128xf32>
    %148 = arith.addf %147, %13 : vector<2x128xf32>
    %149 = arith.mulf %137, %148 : vector<2x128xf32>
    %150 = arith.addf %146, %149 : vector<2x128xf32>
    %151 = math.tanh %150 : vector<2x128xf32>
    %152 = arith.subf %126, %151 : vector<2x128xf32>
    %153 = arith.mulf %145, %152 : vector<2x128xf32>
    %154 = arith.addf %151, %153 : vector<2x128xf32>
    %155 = vector.extract_strided_slice %10 {offsets = [0, 5, 0], sizes = [2, 1, 384], strides = [1, 1, 1]} : vector<2x8x384xf32> to vector<2x1x384xf32>
    %156 = vector.shape_cast %155 : vector<2x1x384xf32> to vector<2x384xf32>
    %cst_30 = arith.constant dense<0.000000e+00> : vector<2x384xf32>
    %157 = tpu.matmul %154, %2, %cst_30 {dimension_numbers = #tpu.dot_dimension_numbers<[1], [0], [0], [1], [0, 0, 1, 1], [], []>} : vector<2x128xf32>, vector<128x384xf32>, vector<2x384xf32> -> vector<2x384xf32>
    %158 = vector.extract_strided_slice %156 {offsets = [0, 0], sizes = [2, 128], strides = [1, 1]} : vector<2x384xf32> to vector<2x128xf32>
    %159 = vector.extract_strided_slice %157 {offsets = [0, 0], sizes = [2, 128], strides = [1, 1]} : vector<2x384xf32> to vector<2x128xf32>
    %160 = arith.addf %158, %159 : vector<2x128xf32>
    %161 = arith.negf %160 : vector<2x128xf32>
    %162 = math.exp %161 : vector<2x128xf32>
    %cst_31 = arith.constant 1.000000e+00 : f32
    %163 = vector.broadcast %cst_31 : f32 to vector<2x128xf32>
    %164 = arith.addf %163, %162 : vector<2x128xf32>
    %165 = arith.divf %163, %164 : vector<2x128xf32>
    %166 = vector.extract_strided_slice %156 {offsets = [0, 128], sizes = [2, 128], strides = [1, 1]} : vector<2x384xf32> to vector<2x128xf32>
    %167 = vector.extract_strided_slice %157 {offsets = [0, 128], sizes = [2, 128], strides = [1, 1]} : vector<2x384xf32> to vector<2x128xf32>
    %168 = arith.addf %166, %167 : vector<2x128xf32>
    %169 = arith.negf %168 : vector<2x128xf32>
    %170 = math.exp %169 : vector<2x128xf32>
    %cst_32 = arith.constant 1.000000e+00 : f32
    %171 = vector.broadcast %cst_32 : f32 to vector<2x128xf32>
    %172 = arith.addf %171, %170 : vector<2x128xf32>
    %173 = arith.divf %171, %172 : vector<2x128xf32>
    %174 = vector.extract_strided_slice %156 {offsets = [0, 256], sizes = [2, 128], strides = [1, 1]} : vector<2x384xf32> to vector<2x128xf32>
    %175 = vector.extract_strided_slice %157 {offsets = [0, 256], sizes = [2, 128], strides = [1, 1]} : vector<2x384xf32> to vector<2x128xf32>
    %176 = arith.addf %175, %13 : vector<2x128xf32>
    %177 = arith.mulf %165, %176 : vector<2x128xf32>
    %178 = arith.addf %174, %177 : vector<2x128xf32>
    %179 = math.tanh %178 : vector<2x128xf32>
    %180 = arith.subf %154, %179 : vector<2x128xf32>
    %181 = arith.mulf %173, %180 : vector<2x128xf32>
    %182 = arith.addf %179, %181 : vector<2x128xf32>
    %183 = vector.extract_strided_slice %10 {offsets = [0, 6, 0], sizes = [2, 1, 384], strides = [1, 1, 1]} : vector<2x8x384xf32> to vector<2x1x384xf32>
    %184 = vector.shape_cast %183 : vector<2x1x384xf32> to vector<2x384xf32>
    %cst_33 = arith.constant dense<0.000000e+00> : vector<2x384xf32>
    %185 = tpu.matmul %182, %2, %cst_33 {dimension_numbers = #tpu.dot_dimension_numbers<[1], [0], [0], [1], [0, 0, 1, 1], [], []>} : vector<2x128xf32>, vector<128x384xf32>, vector<2x384xf32> -> vector<2x384xf32>
    %186 = vector.extract_strided_slice %184 {offsets = [0, 0], sizes = [2, 128], strides = [1, 1]} : vector<2x384xf32> to vector<2x128xf32>
    %187 = vector.extract_strided_slice %185 {offsets = [0, 0], sizes = [2, 128], strides = [1, 1]} : vector<2x384xf32> to vector<2x128xf32>
    %188 = arith.addf %186, %187 : vector<2x128xf32>
    %189 = arith.negf %188 : vector<2x128xf32>
    %190 = math.exp %189 : vector<2x128xf32>
    %cst_34 = arith.constant 1.000000e+00 : f32
    %191 = vector.broadcast %cst_34 : f32 to vector<2x128xf32>
    %192 = arith.addf %191, %190 : vector<2x128xf32>
    %193 = arith.divf %191, %192 : vector<2x128xf32>
    %194 = vector.extract_strided_slice %184 {offsets = [0, 128], sizes = [2, 128], strides = [1, 1]} : vector<2x384xf32> to vector<2x128xf32>
    %195 = vector.extract_strided_slice %185 {offsets = [0, 128], sizes = [2, 128], strides = [1, 1]} : vector<2x384xf32> to vector<2x128xf32>
    %196 = arith.addf %194, %195 : vector<2x128xf32>
    %197 = arith.negf %196 : vector<2x128xf32>
    %198 = math.exp %197 : vector<2x128xf32>
    %cst_35 = arith.constant 1.000000e+00 : f32
    %199 = vector.broadcast %cst_35 : f32 to vector<2x128xf32>
    %200 = arith.addf %199, %198 : vector<2x128xf32>
    %201 = arith.divf %199, %200 : vector<2x128xf32>
    %202 = vector.extract_strided_slice %184 {offsets = [0, 256], sizes = [2, 128], strides = [1, 1]} : vector<2x384xf32> to vector<2x128xf32>
    %203 = vector.extract_strided_slice %185 {offsets = [0, 256], sizes = [2, 128], strides = [1, 1]} : vector<2x384xf32> to vector<2x128xf32>
    %204 = arith.addf %203, %13 : vector<2x128xf32>
    %205 = arith.mulf %193, %204 : vector<2x128xf32>
    %206 = arith.addf %202, %205 : vector<2x128xf32>
    %207 = math.tanh %206 : vector<2x128xf32>
    %208 = arith.subf %182, %207 : vector<2x128xf32>
    %209 = arith.mulf %201, %208 : vector<2x128xf32>
    %210 = arith.addf %207, %209 : vector<2x128xf32>
    %211 = vector.extract_strided_slice %10 {offsets = [0, 7, 0], sizes = [2, 1, 384], strides = [1, 1, 1]} : vector<2x8x384xf32> to vector<2x1x384xf32>
    %212 = vector.shape_cast %211 : vector<2x1x384xf32> to vector<2x384xf32>
    %cst_36 = arith.constant dense<0.000000e+00> : vector<2x384xf32>
    %213 = tpu.matmul %210, %2, %cst_36 {dimension_numbers = #tpu.dot_dimension_numbers<[1], [0], [0], [1], [0, 0, 1, 1], [], []>} : vector<2x128xf32>, vector<128x384xf32>, vector<2x384xf32> -> vector<2x384xf32>
    %214 = vector.extract_strided_slice %212 {offsets = [0, 0], sizes = [2, 128], strides = [1, 1]} : vector<2x384xf32> to vector<2x128xf32>
    %215 = vector.extract_strided_slice %213 {offsets = [0, 0], sizes = [2, 128], strides = [1, 1]} : vector<2x384xf32> to vector<2x128xf32>
    %216 = arith.addf %214, %215 : vector<2x128xf32>
    %217 = arith.negf %216 : vector<2x128xf32>
    %218 = math.exp %217 : vector<2x128xf32>
    %cst_37 = arith.constant 1.000000e+00 : f32
    %219 = vector.broadcast %cst_37 : f32 to vector<2x128xf32>
    %220 = arith.addf %219, %218 : vector<2x128xf32>
    %221 = arith.divf %219, %220 : vector<2x128xf32>
    %222 = vector.extract_strided_slice %212 {offsets = [0, 128], sizes = [2, 128], strides = [1, 1]} : vector<2x384xf32> to vector<2x128xf32>
    %223 = vector.extract_strided_slice %213 {offsets = [0, 128], sizes = [2, 128], strides = [1, 1]} : vector<2x384xf32> to vector<2x128xf32>
    %224 = arith.addf %222, %223 : vector<2x128xf32>
    %225 = arith.negf %224 : vector<2x128xf32>
    %226 = math.exp %225 : vector<2x128xf32>
    %cst_38 = arith.constant 1.000000e+00 : f32
    %227 = vector.broadcast %cst_38 : f32 to vector<2x128xf32>
    %228 = arith.addf %227, %226 : vector<2x128xf32>
    %229 = arith.divf %227, %228 : vector<2x128xf32>
    %230 = vector.extract_strided_slice %212 {offsets = [0, 256], sizes = [2, 128], strides = [1, 1]} : vector<2x384xf32> to vector<2x128xf32>
    %231 = vector.extract_strided_slice %213 {offsets = [0, 256], sizes = [2, 128], strides = [1, 1]} : vector<2x384xf32> to vector<2x128xf32>
    %232 = arith.addf %231, %13 : vector<2x128xf32>
    %233 = arith.mulf %221, %232 : vector<2x128xf32>
    %234 = arith.addf %230, %233 : vector<2x128xf32>
    %235 = math.tanh %234 : vector<2x128xf32>
    %236 = arith.subf %210, %235 : vector<2x128xf32>
    %237 = arith.mulf %229, %236 : vector<2x128xf32>
    %238 = arith.addf %235, %237 : vector<2x128xf32>
    %239 = vector.shape_cast %42 : vector<2x128xf32> to vector<2x1x128xf32>
    %240 = vector.shape_cast %70 : vector<2x128xf32> to vector<2x1x128xf32>
    %241 = vector.shape_cast %98 : vector<2x128xf32> to vector<2x1x128xf32>
    %242 = vector.shape_cast %126 : vector<2x128xf32> to vector<2x1x128xf32>
    %243 = vector.shape_cast %154 : vector<2x128xf32> to vector<2x1x128xf32>
    %244 = vector.shape_cast %182 : vector<2x128xf32> to vector<2x1x128xf32>
    %245 = vector.shape_cast %210 : vector<2x128xf32> to vector<2x1x128xf32>
    %246 = vector.shape_cast %238 : vector<2x128xf32> to vector<2x1x128xf32>
    %247 = tpu.concatenate %239, %240, %241, %242, %243, %244, %245, %246 in 1 : vector<2x1x128xf32>, vector<2x1x128xf32>, vector<2x1x128xf32>, vector<2x1x128xf32>, vector<2x1x128xf32>, vector<2x1x128xf32>, vector<2x1x128xf32>, vector<2x1x128xf32> -> vector<2x8x128xf32>
    %248 = vector.shape_cast %247 : vector<2x8x128xf32> to vector<16x128xf32>
    %cst_39 = arith.constant dense<0.000000e+00> : vector<16x3xf32>
    %249 = tpu.matmul %248, %4, %cst_39 {dimension_numbers = #tpu.dot_dimension_numbers<[1], [0], [0], [1], [0, 0, 1, 1], [], []>} : vector<16x128xf32>, vector<128x3xf32>, vector<16x3xf32> -> vector<16x3xf32>
    %250 = vector.broadcast %5 : vector<1x3xf32> to vector<16x3xf32>
    %251 = arith.addf %249, %250 : vector<16x3xf32>
    %252 = vector.shape_cast %251 : vector<16x3xf32> to vector<2x8x3xf32>
    %c0_40 = arith.constant 0 : index
    %c0_41 = arith.constant 0 : index
    %c0_42 = arith.constant 0 : index
    %253 = vector.load %arg7[%c0_40, %c0_41, %c0_42] : memref<2x8x3xf32, #tpu.memory_space<vmem>>, vector<2x8x3xf32>
    tpu.vector_store %arg7[%c0_40, %c0_41, %c0_42], %252 {strides = array<i32>} : memref<2x8x3xf32, #tpu.memory_space<vmem>>, vector<2x8x3xf32>,
    return
  }
}

</mosaic_0001>

<llo_original>
// kernel: tpu_custom_call.1
$region0: #{tpu_custom_call.1}
  #allocation0 [shape = 'u32[]', space=smem, size = 0x4, offset = 0x4, fixed_abs, tag = 'smem constant byte address 0x4 - core index']
  #allocation1 [shape = 'u32[144,128]{1,0:T(1,128)}', space=vmem, size = 0x12000, scoped, tag = 'internal scratch']
  %s0 = inlined_call_operand.vmem [shape: f32[2,8,6], index: 0, kind: input, shape index: {}]
  %s1 = inlined_call_operand.vmem [shape: f32[6,384], index: 1, kind: input, shape index: {}]
  %s2 = inlined_call_operand.hbm [shape: f32[128,384], index: 2, kind: input, shape index: {}]
  %s3 = inlined_call_operand.vmem [shape: f32[1,384], index: 3, kind: input, shape index: {}]
  %s4 = inlined_call_operand.vmem [shape: f32[1,128], index: 4, kind: input, shape index: {}]
  %s5 = inlined_call_operand.vmem [shape: f32[128,3], index: 5, kind: input, shape index: {}]
  %s6 = inlined_call_operand.vmem [shape: f32[1,3], index: 6, kind: input, shape index: {}]
  %s7 = inlined_call_operand.vmem [shape: f32[2,8,3], index: 7, kind: output, shape index: {}]
  %s8 = sld [smem:[#allocation0]]
  $region42: #{tpu_custom_call.1} parent=0
    _
  %s10 = ssub.s32 1, %s8
  %s11 = scalar_select 0, %s10, %s8
  $region1: #{tpu_custom_call.1} parent=0
    #allocation2 [shape = 'u8[196608]{0}', space=vmem, size = 0x30000, scoped, tag = 'input window, operand 2, single buffered']
    #allocation3 [shape = 's32[1]{0}', space=sflag, size = 0x4, scoped, tag = 'scoped memory for tpu_custom_call.1']
    %12 = vsyncpa [#allocation3], 0
    // Predicated region
    $region2: #{tpu_custom_call.1} parent=1 // pred_check
      _
    $region3: #{tpu_custom_call.1} parent=1 // pred_check_branch
      %14 = sbr.rel (0) target = $region5
    $region4: #{tpu_custom_call.1} parent=1 // pred_region
      _
    $region5: #{tpu_custom_call.1} parent=1 // pred_fallthru
      _
    // Predicated region
    $region6: #{tpu_custom_call.1} parent=1 // pred_check
      _
    $region7: #{tpu_custom_call.1} parent=1 // pred_check_branch
      %16 = sbr.rel (0) target = $region9
    $region8: #{tpu_custom_call.1} parent=1 // pred_region
      _
    $region9: #{tpu_custom_call.1} parent=1 // pred_fallthru
      _
    // Predicated region
    $region10: #{tpu_custom_call.1} parent=1 // pred_check
      _
    $region11: #{tpu_custom_call.1} parent=1 // pred_check_branch
      %18 = sbr.rel (0) target = $region13
    $region12: #{tpu_custom_call.1} parent=1 // pred_region
      %s20 = ssub.s32 6144, 6144
      %21 = vsyncadd [#allocation3], %s20
      %s22 = sshll.u32 [#allocation2], 4
      %s23 = int_to_ptr.vmem [resolvable:$true] %s22
      %28 = dma.hbm_to_vmem [thread:$0]  %s2, 6144, %s23, [#allocation3], 384, 384, 24
    $region13: #{tpu_custom_call.1} parent=1 // pred_fallthru
      _
    // Predicated region
    $region14: #{tpu_custom_call.1} parent=1 // pred_check
      _
    $region15: #{tpu_custom_call.1} parent=1 // pred_check_branch
      %30 = sbr.rel (0) target = $region17
    $region16: #{tpu_custom_call.1} parent=1 // pred_region
      _
    $region17: #{tpu_custom_call.1} parent=1 // pred_fallthru
      _
    // Predicated region
    $region18: #{tpu_custom_call.1} parent=1 // pred_check
      _
    $region19: #{tpu_custom_call.1} parent=1 // pred_check_branch
      %32 = sbr.rel (0) target = $region21
    $region20: #{tpu_custom_call.1} parent=1 // pred_region
      _
    $region21: #{tpu_custom_call.1} parent=1 // pred_fallthru
      _
    // Predicated region
    $region22: #{tpu_custom_call.1} parent=1 // pred_check
      _
    $region23: #{tpu_custom_call.1} parent=1 // pred_check_branch
      %34 = sbr.rel (0) target = $region25
    $region24: #{tpu_custom_call.1} parent=1 // pred_region
      _
    $region25: #{tpu_custom_call.1} parent=1 // pred_fallthru
      _
    // Predicated region
    $region26: #{tpu_custom_call.1} parent=1 // pred_check
      _
    $region27: #{tpu_custom_call.1} parent=1 // pred_check_branch
      %36 = sbr.rel (0) target = $region29
    $region28: #{tpu_custom_call.1} parent=1 // pred_region
      _
    $region29: #{tpu_custom_call.1} parent=1 // pred_fallthru
      _
    // Predicated region
    $region30: #{tpu_custom_call.1} parent=1 // pred_check
      _
    $region31: #{tpu_custom_call.1} parent=1 // pred_check_branch
      %38 = sbr.rel (0) target = $region33
    $region32: #{tpu_custom_call.1} parent=1 // pred_region
      %39 = dma.done [#allocation3], 6144
    $region33: #{tpu_custom_call.1} parent=1 // pred_fallthru
      _
    %v40 = vld [vmem:[%s0] sm:$0xff]
    %v41 = vld [vmem:[%s0 + $0x8] sm:$0xff]
    %v42 = vld [vmem:[%s1] sm:$0x3f]
    %v43 = vld [vmem:[%s1 + $0x8] sm:$0x3f]
    %v44 = vld [vmem:[%s1 + $0x10] sm:$0x3f]
    %v45 = vld [vmem:[#allocation2] sm:$0xff]
    %v46 = vld [vmem:[#allocation2 + $0x8] sm:$0xff]
    %v47 = vld [vmem:[#allocation2 + $0x10] sm:$0xff]
    %v48 = vld [vmem:[#allocation2 + $0x18] sm:$0xff]
    %v49 = vld [vmem:[#allocation2 + $0x20] sm:$0xff]
    %v50 = vld [vmem:[#allocation2 + $0x28] sm:$0xff]
    %v51 = vld [vmem:[#allocation2 + $0x30] sm:$0xff]
    %v52 = vld [vmem:[#allocation2 + $0x38] sm:$0xff]
    %v53 = vld [vmem:[#allocation2 + $0x40] sm:$0xff]
    %v54 = vld [vmem:[#allocation2 + $0x48] sm:$0xff]
    %v55 = vld [vmem:[#allocation2 + $0x50] sm:$0xff]
    %v56 = vld [vmem:[#allocation2 + $0x58] sm:$0xff]
    %v57 = vld [vmem:[#allocation2 + $0x60] sm:$0xff]
    %v58 = vld [vmem:[#allocation2 + $0x68] sm:$0xff]
    %v59 = vld [vmem:[#allocation2 + $0x70] sm:$0xff]
    %v60 = vld [vmem:[#allocation2 + $0x78] sm:$0xff]
    %v61 = vld [vmem:[#allocation2 + $0x80] sm:$0xff]
    %v62 = vld [vmem:[#allocation2 + $0x88] sm:$0xff]
    %v63 = vld [vmem:[#allocation2 + $0x90] sm:$0xff]
    %v64 = vld [vmem:[#allocation2 + $0x98] sm:$0xff]
    %v65 = vld [vmem:[#allocation2 + $0xa0] sm:$0xff]
    %v66 = vld [vmem:[#allocation2 + $0xa8] sm:$0xff]
    %v67 = vld [vmem:[#allocation2 + $0xb0] sm:$0xff]
    %v68 = vld [vmem:[#allocation2 + $0xb8] sm:$0xff]
    %v69 = vld [vmem:[#allocation2 + $0xc0] sm:$0xff]
    %v70 = vld [vmem:[#allocation2 + $0xc8] sm:$0xff]
    %v71 = vld [vmem:[#allocation2 + $0xd0] sm:$0xff]
    %v72 = vld [vmem:[#allocation2 + $0xd8] sm:$0xff]
    %v73 = vld [vmem:[#allocation2 + $0xe0] sm:$0xff]
    %v74 = vld [vmem:[#allocation2 + $0xe8] sm:$0xff]
    %v75 = vld [vmem:[#allocation2 + $0xf0] sm:$0xff]
    %v76 = vld [vmem:[#allocation2 + $0xf8] sm:$0xff]
    %v77 = vld [vmem:[#allocation2 + $0x100] sm:$0xff]
    %v78 = vld [vmem:[#allocation2 + $0x108] sm:$0xff]
    %v79 = vld [vmem:[#allocation2 + $0x110] sm:$0xff]
    %v80 = vld [vmem:[#allocation2 + $0x118] sm:$0xff]
    %v81 = vld [vmem:[#allocation2 + $0x120] sm:$0xff]
    %v82 = vld [vmem:[#allocation2 + $0x128] sm:$0xff]
    %v83 = vld [vmem:[#allocation2 + $0x130] sm:$0xff]
    %v84 = vld [vmem:[#allocation2 + $0x138] sm:$0xff]
    %v85 = vld [vmem:[#allocation2 + $0x140] sm:$0xff]
    %v86 = vld [vmem:[#allocation2 + $0x148] sm:$0xff]
    %v87 = vld [vmem:[#allocation2 + $0x150] sm:$0xff]
    %v88 = vld [vmem:[#allocation2 + $0x158] sm:$0xff]
    %v89 = vld [vmem:[#allocation2 + $0x160] sm:$0xff]
    %v90 = vld [vmem:[#allocation2 + $0x168] sm:$0xff]
    %v91 = vld [vmem:[#allocation2 + $0x170] sm:$0xff]
    %v92 = vld [vmem:[#allocation2 + $0x178] sm:$0xff]
    %v93 = vld [vmem:[%s3] sm:$0x7]
    %v94 = vld [vmem:[%s5] sm:$0xff]
    %v95 = vld [vmem:[%s5 + $0x8] sm:$0xff]
    %v96 = vld [vmem:[%s5 + $0x10] sm:$0xff]
    %v97 = vld [vmem:[%s5 + $0x18] sm:$0xff]
    %v98 = vld [vmem:[%s5 + $0x20] sm:$0xff]
    %v99 = vld [vmem:[%s5 + $0x28] sm:$0xff]
    %v100 = vld [vmem:[%s5 + $0x30] sm:$0xff]
    %v101 = vld [vmem:[%s5 + $0x38] sm:$0xff]
    %v102 = vld [vmem:[%s5 + $0x40] sm:$0xff]
    %v103 = vld [vmem:[%s5 + $0x48] sm:$0xff]
    %v104 = vld [vmem:[%s5 + $0x50] sm:$0xff]
    %v105 = vld [vmem:[%s5 + $0x58] sm:$0xff]
    %v106 = vld [vmem:[%s5 + $0x60] sm:$0xff]
    %v107 = vld [vmem:[%s5 + $0x68] sm:$0xff]
    %v108 = vld [vmem:[%s5 + $0x70] sm:$0xff]
    %v109 = vld [vmem:[%s5 + $0x78] sm:$0xff]
    %v110 = vld [vmem:[%s6] sm:$0x1]
    %v112 = vlaneseq
    %v113 = vshrl.u32 %v112, 7
    %v114 = vsub.s32 0, %v113
    %v115 = vrot.slane %v93, %v114
    %v116 = vlaneseq
    %v117 = vshrl.u32 %v116, 7
    %v118 = vsub.s32 1, %v117
    %v119 = vrot.slane %v93, %v118
    %v120 = vlaneseq
    %v121 = vshrl.u32 %v120, 7
    %v122 = vsub.s32 2, %v121
    %v123 = vrot.slane %v93, %v122
    %vm127 = vcmask 48128
    %v129 = vsel %vm127, %v40, 0
    %v132 = vsel %vm127, %v41, 0
    %vm134 = vcmask 1045504
    %v136 = vsel %vm134, %v42, 0
    %v139 = vsel %vm134, %v43, 0
    %v142 = vsel %vm134, %v44, 0
    %144 = vmatprep.subr.mxu0 %v139
    %145 = vmatpush1.msra.mxu0 %v136
    %146 = vmatprep.subr.mxu0 0.0
    %147 = vmatpush1.msra.mxu0 0.0
    %148 = vmatprep.subr.mxu0 0.0
    %149 = vmatpush1.msra.mxu0 0.0
    %150 = vmatprep.subr.mxu0 0.0
    %151 = vmatpush1.msra.mxu0 0.0
    %152 = vmatprep.subr.mxu0 0.0
    %153 = vmatpush1.msra.mxu0 0.0
    %154 = vmatprep.subr.mxu0 0.0
    %155 = vmatpush1.msra.mxu0 0.0
    %156 = vmatprep.subr.mxu0 0.0
    %157 = vmatpush1.msra.mxu0 0.0
    %158 = vmatprep.subr.mxu0 0.0
    %159 = vmatpush1.msra.mxu0 0.0
    %160 = vmatprep.subr.mxu0 0.0
    %161 = vmatpush1.msra.mxu0 0.0
    %162 = vmatprep.subr.mxu0 0.0
    %163 = vmatpush1.msra.mxu0 0.0
    %164 = vmatprep.subr.mxu0 0.0
    %165 = vmatpush1.msra.mxu0 0.0
    %166 = vmatprep.subr.mxu0 0.0
    %167 = vmatpush1.msra.mxu0 0.0
    %168 = vmatprep.subr.mxu0 0.0
    %169 = vmatpush1.msra.mxu0 0.0
    %170 = vmatprep.subr.mxu0 0.0
    %171 = vmatpush1.msra.mxu0 0.0
    %172 = vmatprep.subr.mxu0 0.0
    %173 = vmatpush1.msra.mxu0 0.0
    %174 = vmatprep.subr.mxu0 0.0
    %175 = vmatpush1.msra.mxu0 0.0
    %176 = vmatprep.subr.mxu0 0.0
    %177 = vmatpush1.msra.mxu0 0.0
    %178 = vmatprep.subr.mxu0 0.0
    %179 = vmatpush1.msra.mxu0 0.0
    %180 = vmatprep.subr.mxu0 0.0
    %181 = vmatpush1.msra.mxu0 0.0
    %182 = vmatprep.subr.mxu0 0.0
    %183 = vmatpush1.msra.mxu0 0.0
    %184 = vmatprep.subr.mxu0 0.0
    %185 = vmatpush1.msra.mxu0 0.0
    %186 = vmatprep.subr.mxu0 0.0
    %187 = vmatpush1.msra.mxu0 0.0
    %188 = vmatprep.subr.mxu0 0.0
    %189 = vmatpush1.msra.mxu0 0.0
    %190 = vmatprep.subr.mxu0 0.0
    %191 = vmatpush1.msra.mxu0 0.0
    %192 = vmatprep.subr.mxu0 0.0
    %193 = vmatpush1.msra.mxu0 0.0
    %194 = vmatprep.subr.mxu0 0.0
    %195 = vmatpush1.msra.mxu0 0.0
    %196 = vmatprep.subr.mxu0 0.0
    %197 = vmatpush1.msra.mxu0 0.0
    %198 = vmatprep.subr.mxu0 0.0
    %199 = vmatpush1.msra.mxu0 0.0
    %200 = vmatprep.subr.mxu0 0.0
    %201 = vmatpush1.msra.mxu0 0.0
    %202 = vmatprep.subr.mxu0 0.0
    %203 = vmatpush1.msra.mxu0 0.0
    %204 = vmatprep.subr.mxu0 0.0
    %205 = vmatpush1.msra.mxu0 0.0
    %206 = vmatprep.subr.mxu0 0.0
    %207 = vmatpush1.msra.mxu0 0.0
    %208 = vmatprep.mubr.f32.mxu0 0.0
    %209 = vmatmul.mubr.f32.gmra.mrb[0].mxu0 %v129
    %v210 = vpop.f32.mrb[0].mxu0
    %v211 = vadd.f32 %v115, %v210
    %v212 = vpop.f32.mrb[0].mxu0
    %v213 = vadd.f32 %v119, %v212
    %214 = vmatprep.mubr.f32.mxu0 0.0
    %215 = vmatmul.mubr.f32.gmra.mrb[0].mxu0 %v132
    %v216 = vpop.f32.mrb[0].mxu0
    %v217 = vadd.f32 %v115, %v216
    %v218 = vpop.f32.mrb[0].mxu0
    %v219 = vadd.f32 %v119, %v218
    %220 = vdwg.mxu0
    %221 = vmatprep.subr.mxu0 0.0
    %222 = vmatpush1.msra.mxu0 %v142
    %223 = vmatprep.subr.mxu0 0.0
    %224 = vmatpush1.msra.mxu0 0.0
    %225 = vmatprep.subr.mxu0 0.0
    %226 = vmatpush1.msra.mxu0 0.0
    %227 = vmatprep.subr.mxu0 0.0
    %228 = vmatpush1.msra.mxu0 0.0
    %229 = vmatprep.subr.mxu0 0.0
    %230 = vmatpush1.msra.mxu0 0.0
    %231 = vmatprep.subr.mxu0 0.0
    %232 = vmatpush1.msra.mxu0 0.0
    %233 = vmatprep.subr.mxu0 0.0
    %234 = vmatpush1.msra.mxu0 0.0
    %235 = vmatprep.subr.mxu0 0.0
    %236 = vmatpush1.msra.mxu0 0.0
    %237 = vmatprep.subr.mxu0 0.0
    %238 = vmatpush1.msra.mxu0 0.0
    %239 = vmatprep.subr.mxu0 0.0
    %240 = vmatpush1.msra.mxu0 0.0
    %241 = vmatprep.subr.mxu0 0.0
    %242 = vmatpush1.msra.mxu0 0.0
    %243 = vmatprep.subr.mxu0 0.0
    %244 = vmatpush1.msra.mxu0 0.0
    %245 = vmatprep.subr.mxu0 0.0
    %246 = vmatpush1.msra.mxu0 0.0
    %247 = vmatprep.subr.mxu0 0.0
    %248 = vmatpush1.msra.mxu0 0.0
    %249 = vmatprep.subr.mxu0 0.0
    %250 = vmatpush1.msra.mxu0 0.0
    %251 = vmatprep.subr.mxu0 0.0
    %252 = vmatpush1.msra.mxu0 0.0
    %253 = vmatprep.subr.mxu0 0.0
    %254 = vmatpush1.msra.mxu0 0.0
    %255 = vmatprep.subr.mxu0 0.0
    %256 = vmatpush1.msra.mxu0 0.0
    %257 = vmatprep.subr.mxu0 0.0
    %258 = vmatpush1.msra.mxu0 0.0
    %259 = vmatprep.subr.mxu0 0.0
    %260 = vmatpush1.msra.mxu0 0.0
    %261 = vmatprep.subr.mxu0 0.0
    %262 = vmatpush1.msra.mxu0 0.0
    %263 = vmatprep.subr.mxu0 0.0
    %264 = vmatpush1.msra.mxu0 0.0
    %265 = vmatprep.subr.mxu0 0.0
    %266 = vmatpush1.msra.mxu0 0.0
    %267 = vmatprep.subr.mxu0 0.0
    %268 = vmatpush1.msra.mxu0 0.0
    %269 = vmatprep.subr.mxu0 0.0
    %270 = vmatpush1.msra.mxu0 0.0
    %271 = vmatprep.subr.mxu0 0.0
    %272 = vmatpush1.msra.mxu0 0.0
    %273 = vmatprep.subr.mxu0 0.0
    %274 = vmatpush1.msra.mxu0 0.0
    %275 = vmatprep.subr.mxu0 0.0
    %276 = vmatpush1.msra.mxu0 0.0
    %277 = vmatprep.subr.mxu0 0.0
    %278 = vmatpush1.msra.mxu0 0.0
    %279 = vmatprep.subr.mxu0 0.0
    %280 = vmatpush1.msra.mxu0 0.0
    %281 = vmatprep.subr.mxu0 0.0
    %282 = vmatpush1.msra.mxu0 0.0
    %283 = vmatprep.subr.mxu0 0.0
    %284 = vmatpush1.msra.mxu0 0.0
    %285 = vmatprep.mubr.f32.mxu0 0.0
    %286 = vmatmul.mubr.f32.gmra.mrb[0].mxu0 %v129
    %v287 = vpop.f32.mrb[0].mxu0
    %v288 = vadd.f32 %v123, %v287
    %v289 = vpop.f32.mrb[0].mxu0
    %290 = vmatprep.mubr.f32.mxu0 0.0
    %291 = vmatmul.mubr.f32.gmra.mrb[0].mxu0 %v132
    %v292 = vpop.f32.mrb[0].mxu0
    %v293 = vadd.f32 %v123, %v292
    %v294 = vpop.f32.mrb[0].mxu0
    %295 = vdwg.mxu0
    %v296 = vld [vmem:[%s4] sm:$0x1]
    %v298 = vlaneseq
    %v299 = vshrl.u32 %v298, 7
    %v300 = vsub.s32 0, %v299
    %v301 = vrot.slane %v296, %v300
    %303 = vmatprep.subr.mxu0 %v46
    %304 = vmatpush1.msra.mxu0 %v45
    %305 = vmatprep.subr.mxu0 %v49
    %306 = vmatpush1.msra.mxu0 %v48
    %307 = vmatprep.subr.mxu0 %v52
    %308 = vmatpush1.msra.mxu0 %v51
    %309 = vmatprep.subr.mxu0 %v55
    %310 = vmatpush1.msra.mxu0 %v54
    %311 = vmatprep.subr.mxu0 %v58
    %312 = vmatpush1.msra.mxu0 %v57
    %313 = vmatprep.subr.mxu0 %v61
    %314 = vmatpush1.msra.mxu0 %v60
    %315 = vmatprep.subr.mxu0 %v64
    %316 = vmatpush1.msra.mxu0 %v63
    %317 = vmatprep.subr.mxu0 %v67
    %318 = vmatpush1.msra.mxu0 %v66
    %319 = vmatprep.subr.mxu0 %v70
    %320 = vmatpush1.msra.mxu0 %v69
    %321 = vmatprep.subr.mxu0 %v73
    %322 = vmatpush1.msra.mxu0 %v72
    %323 = vmatprep.subr.mxu0 %v76
    %324 = vmatpush1.msra.mxu0 %v75
    %325 = vmatprep.subr.mxu0 %v79
    %326 = vmatpush1.msra.mxu0 %v78
    %327 = vmatprep.subr.mxu0 %v82
    %328 = vmatpush1.msra.mxu0 %v81
    %329 = vmatprep.subr.mxu0 %v85
    %330 = vmatpush1.msra.mxu0 %v84
    %331 = vmatprep.subr.mxu0 %v88
    %332 = vmatpush1.msra.mxu0 %v87
    %333 = vmatprep.subr.mxu0 %v91
    %334 = vmatpush1.msra.mxu0 %v90
    %335 = vmatprep.subr.mxu0 0.0
    %336 = vmatpush1.msra.mxu0 0.0
    %337 = vmatprep.subr.mxu0 0.0
    %338 = vmatpush1.msra.mxu0 0.0
    %339 = vmatprep.subr.mxu0 0.0
    %340 = vmatpush1.msra.mxu0 0.0
    %341 = vmatprep.subr.mxu0 0.0
    %342 = vmatpush1.msra.mxu0 0.0
    %343 = vmatprep.subr.mxu0 0.0
    %344 = vmatpush1.msra.mxu0 0.0
    %345 = vmatprep.subr.mxu0 0.0
    %346 = vmatpush1.msra.mxu0 0.0
    %347 = vmatprep.subr.mxu0 0.0
    %348 = vmatpush1.msra.mxu0 0.0
    %349 = vmatprep.subr.mxu0 0.0
    %350 = vmatpush1.msra.mxu0 0.0
    %351 = vmatprep.subr.mxu0 0.0
    %352 = vmatpush1.msra.mxu0 0.0
    %353 = vmatprep.subr.mxu0 0.0
    %354 = vmatpush1.msra.mxu0 0.0
    %355 = vmatprep.subr.mxu0 0.0
    %356 = vmatpush1.msra.mxu0 0.0
    %357 = vmatprep.subr.mxu0 0.0
    %358 = vmatpush1.msra.mxu0 0.0
    %359 = vmatprep.subr.mxu0 0.0
    %360 = vmatpush1.msra.mxu0 0.0
    %361 = vmatprep.subr.mxu0 0.0
    %362 = vmatpush1.msra.mxu0 0.0
    %363 = vmatprep.subr.mxu0 0.0
    %364 = vmatpush1.msra.mxu0 0.0
    %365 = vmatprep.subr.mxu0 0.0
    %366 = vmatpush1.msra.mxu0 0.0
    %367 = vmatprep.mubr.f32.mxu0 0.0
    %368 = vmatmul.mubr.f32.gmra.mrb[0].mxu0 0.0
    %v369 = vpop.f32.mrb[0].mxu0
    %v370 = vadd.f32 0.0, %v369
    %v371 = vpop.f32.mrb[0].mxu0
    %v372 = vadd.f32 0.0, %v371
    %373 = vdwg.mxu0
    %374 = vmatprep.subr.mxu0 0.0
    %375 = vmatpush1.msra.mxu0 %v47
    %376 = vmatprep.subr.mxu0 0.0
    %377 = vmatpush1.msra.mxu0 %v50
    %378 = vmatprep.subr.mxu0 0.0
    %379 = vmatpush1.msra.mxu0 %v53
    %380 = vmatprep.subr.mxu0 0.0
    %381 = vmatpush1.msra.mxu0 %v56
    %382 = vmatprep.subr.mxu0 0.0
    %383 = vmatpush1.msra.mxu0 %v59
    %384 = vmatprep.subr.mxu0 0.0
    %385 = vmatpush1.msra.mxu0 %v62
    %386 = vmatprep.subr.mxu0 0.0
    %387 = vmatpush1.msra.mxu0 %v65
    %388 = vmatprep.subr.mxu0 0.0
    %389 = vmatpush1.msra.mxu0 %v68
    %390 = vmatprep.subr.mxu0 0.0
    %391 = vmatpush1.msra.mxu0 %v71
    %392 = vmatprep.subr.mxu0 0.0
    %393 = vmatpush1.msra.mxu0 %v74
    %394 = vmatprep.subr.mxu0 0.0
    %395 = vmatpush1.msra.mxu0 %v77
    %396 = vmatprep.subr.mxu0 0.0
    %397 = vmatpush1.msra.mxu0 %v80
    %398 = vmatprep.subr.mxu0 0.0
    %399 = vmatpush1.msra.mxu0 %v83
    %400 = vmatprep.subr.mxu0 0.0
    %401 = vmatpush1.msra.mxu0 %v86
    %402 = vmatprep.subr.mxu0 0.0
    %403 = vmatpush1.msra.mxu0 %v89
    %404 = vmatprep.subr.mxu0 0.0
    %405 = vmatpush1.msra.mxu0 %v92
    %406 = vmatprep.subr.mxu0 0.0
    %407 = vmatpush1.msra.mxu0 0.0
    %408 = vmatprep.subr.mxu0 0.0
    %409 = vmatpush1.msra.mxu0 0.0
    %410 = vmatprep.subr.mxu0 0.0
    %411 = vmatpush1.msra.mxu0 0.0
    %412 = vmatprep.subr.mxu0 0.0
    %413 = vmatpush1.msra.mxu0 0.0
    %414 = vmatprep.subr.mxu0 0.0
    %415 = vmatpush1.msra.mxu0 0.0
    %416 = vmatprep.subr.mxu0 0.0
    %417 = vmatpush1.msra.mxu0 0.0
    %418 = vmatprep.subr.mxu0 0.0
    %419 = vmatpush1.msra.mxu0 0.0
    %420 = vmatprep.subr.mxu0 0.0
    %421 = vmatpush1.msra.mxu0 0.0
    %422 = vmatprep.subr.mxu0 0.0
    %423 = vmatpush1.msra.mxu0 0.0
    %424 = vmatprep.subr.mxu0 0.0
    %425 = vmatpush1.msra.mxu0 0.0
    %426 = vmatprep.subr.mxu0 0.0
    %427 = vmatpush1.msra.mxu0 0.0
    %428 = vmatprep.subr.mxu0 0.0
    %429 = vmatpush1.msra.mxu0 0.0
    %430 = vmatprep.subr.mxu0 0.0
    %431 = vmatpush1.msra.mxu0 0.0
    %432 = vmatprep.subr.mxu0 0.0
    %433 = vmatpush1.msra.mxu0 0.0
    %434 = vmatprep.subr.mxu0 0.0
    %435 = vmatpush1.msra.mxu0 0.0
    %436 = vmatprep.subr.mxu0 0.0
    %437 = vmatpush1.msra.mxu0 0.0
    %438 = vmatprep.mubr.f32.mxu0 0.0
    %439 = vmatmul.mubr.f32.gmra.mrb[0].mxu0 0.0
    %v440 = vpop.f32.mrb[0].mxu0
    %v441 = vadd.f32 0.0, %v440
    %v442 = vpop.f32.mrb[0].mxu0
    %443 = vdwg.mxu0
    %v445 = vrot.slane %v370, 1
    %v448 = vadd.f32 %v211, %v370
    %v449 = vadd.f32 %v217, %v445
    %v450 = vxor.u32 %v448, 2147483648
    %v451 = vxor.u32 %v449, 2147483648
    %v452 = vmul.f32 %v450, 1.442695
    %v453 = vpow.pop %v452
    %v454 = vmul.f32 %v451, 1.442695
    %v455 = vpow.pop %v454
    %v456 = vadd.f32 %v453, 1.0
    %v457 = vadd.f32 %v455, 1.0
    %v458 = vrcp.pop %v456
    %v459 = vmul.f32 1.0, %v458
    %v460 = vrcp.pop %v457
    %v461 = vmul.f32 1.0, %v460
    %v463 = vrot.slane %v372, 1
    %v466 = vadd.f32 %v213, %v372
    %v467 = vadd.f32 %v219, %v463
    %v468 = vxor.u32 %v466, 2147483648
    %v469 = vxor.u32 %v467, 2147483648
    %v470 = vmul.f32 %v468, 1.442695
    %v471 = vpow.pop %v470
    %v472 = vmul.f32 %v469, 1.442695
    %v473 = vpow.pop %v472
    %v474 = vadd.f32 %v471, 1.0
    %v475 = vadd.f32 %v473, 1.0
    %v476 = vrcp.pop %v474
    %v477 = vmul.f32 1.0, %v476
    %v478 = vrcp.pop %v475
    %v479 = vmul.f32 1.0, %v478
    %v480 = vadd.f32 %v441, %v301
    %v482 = vrot.slane %v480, 1
    %v485 = vmul.f32 %v459, %v480
    %v486 = vmul.f32 %v461, %v482
    %v487 = vadd.f32 %v288, %v485
    %v488 = vadd.f32 %v293, %v486
    %v489 = vtanh.pop %v487
    %v490 = vtanh.pop %v488
    %v491 = vsub.f32 0.0, %v489
    %v492 = vsub.f32 0.0, %v490
    %v493 = vmul.f32 %v477, %v491
    %v494 = vmul.f32 %v479, %v492
    %v495 = vadd.f32 %v489, %v493
    %v496 = vadd.f32 %v490, %v494
    %v499 = vrot.slane %v496, 7
    %vm500 = vcmask 1041409
    %v501 = vsel %vm500, %v499, %v495
    %503 = vmatprep.subr.mxu0 %v46
    %504 = vmatpush1.msra.mxu0 %v45
    %505 = vmatprep.subr.mxu0 %v49
    %506 = vmatpush1.msra.mxu0 %v48
    %507 = vmatprep.subr.mxu0 %v52
    %508 = vmatpush1.msra.mxu0 %v51
    %509 = vmatprep.subr.mxu0 %v55
    %510 = vmatpush1.msra.mxu0 %v54
    %511 = vmatprep.subr.mxu0 %v58
    %512 = vmatpush1.msra.mxu0 %v57
    %513 = vmatprep.subr.mxu0 %v61
    %514 = vmatpush1.msra.mxu0 %v60
    %515 = vmatprep.subr.mxu0 %v64
    %516 = vmatpush1.msra.mxu0 %v63
    %517 = vmatprep.subr.mxu0 %v67
    %518 = vmatpush1.msra.mxu0 %v66
    %519 = vmatprep.subr.mxu0 %v70
    %520 = vmatpush1.msra.mxu0 %v69
    %521 = vmatprep.subr.mxu0 %v73
    %522 = vmatpush1.msra.mxu0 %v72
    %523 = vmatprep.subr.mxu0 %v76
    %524 = vmatpush1.msra.mxu0 %v75
    %525 = vmatprep.subr.mxu0 %v79
    %526 = vmatpush1.msra.mxu0 %v78
    %527 = vmatprep.subr.mxu0 %v82
    %528 = vmatpush1.msra.mxu0 %v81
    %529 = vmatprep.subr.mxu0 %v85
    %530 = vmatpush1.msra.mxu0 %v84
    %531 = vmatprep.subr.mxu0 %v88
    %532 = vmatpush1.msra.mxu0 %v87
    %533 = vmatprep.subr.mxu0 %v91
    %534 = vmatpush1.msra.mxu0 %v90
    %535 = vmatprep.subr.mxu0 0.0
    %536 = vmatpush1.msra.mxu0 0.0
    %537 = vmatprep.subr.mxu0 0.0
    %538 = vmatpush1.msra.mxu0 0.0
    %539 = vmatprep.subr.mxu0 0.0
    %540 = vmatpush1.msra.mxu0 0.0
    %541 = vmatprep.subr.mxu0 0.0
    %542 = vmatpush1.msra.mxu0 0.0
    %543 = vmatprep.subr.mxu0 0.0
    %544 = vmatpush1.msra.mxu0 0.0
    %545 = vmatprep.subr.mxu0 0.0
    %546 = vmatpush1.msra.mxu0 0.0
    %547 = vmatprep.subr.mxu0 0.0
    %548 = vmatpush1.msra.mxu0 0.0
    %549 = vmatprep.subr.mxu0 0.0
    %550 = vmatpush1.msra.mxu0 0.0
    %551 = vmatprep.subr.mxu0 0.0
    %552 = vmatpush1.msra.mxu0 0.0
    %553 = vmatprep.subr.mxu0 0.0
    %554 = vmatpush1.msra.mxu0 0.0
    %555 = vmatprep.subr.mxu0 0.0
    %556 = vmatpush1.msra.mxu0 0.0
    %557 = vmatprep.subr.mxu0 0.0
    %558 = vmatpush1.msra.mxu0 0.0
    %559 = vmatprep.subr.mxu0 0.0
    %560 = vmatpush1.msra.mxu0 0.0
    %561 = vmatprep.subr.mxu0 0.0
    %562 = vmatpush1.msra.mxu0 0.0
    %563 = vmatprep.subr.mxu0 0.0
    %564 = vmatpush1.msra.mxu0 0.0
    %565 = vmatprep.subr.mxu0 0.0
    %566 = vmatpush1.msra.mxu0 0.0
    %567 = vmatprep.mubr.f32.mxu0 0.0
    %568 = vmatmul.mubr.f32.gmra.mrb[0].mxu0 %v501
    %v569 = vpop.f32.mrb[0].mxu0
    %v570 = vadd.f32 0.0, %v569
    %v571 = vpop.f32.mrb[0].mxu0
    %v572 = vadd.f32 0.0, %v571
    %573 = vdwg.mxu0
    %574 = vmatprep.subr.mxu0 0.0
    %575 = vmatpush1.msra.mxu0 %v47
    %576 = vmatprep.subr.mxu0 0.0
    %577 = vmatpush1.msra.mxu0 %v50
    %578 = vmatprep.subr.mxu0 0.0
    %579 = vmatpush1.msra.mxu0 %v53
    %580 = vmatprep.subr.mxu0 0.0
    %581 = vmatpush1.msra.mxu0 %v56
    %582 = vmatprep.subr.mxu0 0.0
    %583 = vmatpush1.msra.mxu0 %v59
    %584 = vmatprep.subr.mxu0 0.0
    %585 = vmatpush1.msra.mxu0 %v62
    %586 = vmatprep.subr.mxu0 0.0
    %587 = vmatpush1.msra.mxu0 %v65
    %588 = vmatprep.subr.mxu0 0.0
    %589 = vmatpush1.msra.mxu0 %v68
    %590 = vmatprep.subr.mxu0 0.0
    %591 = vmatpush1.msra.mxu0 %v71
    %592 = vmatprep.subr.mxu0 0.0
    %593 = vmatpush1.msra.mxu0 %v74
    %594 = vmatprep.subr.mxu0 0.0
    %595 = vmatpush1.msra.mxu0 %v77
    %596 = vmatprep.subr.mxu0 0.0
    %597 = vmatpush1.msra.mxu0 %v80
    %598 = vmatprep.subr.mxu0 0.0
    %599 = vmatpush1.msra.mxu0 %v83
    %600 = vmatprep.subr.mxu0 0.0
    %601 = vmatpush1.msra.mxu0 %v86
    %602 = vmatprep.subr.mxu0 0.0
    %603 = vmatpush1.msra.mxu0 %v89
    %604 = vmatprep.subr.mxu0 0.0
    %605 = vmatpush1.msra.mxu0 %v92
    %606 = vmatprep.subr.mxu0 0.0
    %607 = vmatpush1.msra.mxu0 0.0
    %608 = vmatprep.subr.mxu0 0.0
    %609 = vmatpush1.msra.mxu0 0.0
    %610 = vmatprep.subr.mxu0 0.0
    %611 = vmatpush1.msra.mxu0 0.0
    %612 = vmatprep.subr.mxu0 0.0
    %613 = vmatpush1.msra.mxu0 0.0
    %614 = vmatprep.subr.mxu0 0.0
    %615 = vmatpush1.msra.mxu0 0.0
    %616 = vmatprep.subr.mxu0 0.0
    %617 = vmatpush1.msra.mxu0 0.0
    %618 = vmatprep.subr.mxu0 0.0
    %619 = vmatpush1.msra.mxu0 0.0
    %620 = vmatprep.subr.mxu0 0.0
    %621 = vmatpush1.msra.mxu0 0.0
    %622 = vmatprep.subr.mxu0 0.0
    %623 = vmatpush1.msra.mxu0 0.0
    %624 = vmatprep.subr.mxu0 0.0
    %625 = vmatpush1.msra.mxu0 0.0
    %626 = vmatprep.subr.mxu0 0.0
    %627 = vmatpush1.msra.mxu0 0.0
    %628 = vmatprep.subr.mxu0 0.0
    %629 = vmatpush1.msra.mxu0 0.0
    %630 = vmatprep.subr.mxu0 0.0
    %631 = vmatpush1.msra.mxu0 0.0
    %632 = vmatprep.subr.mxu0 0.0
    %633 = vmatpush1.msra.mxu0 0.0
    %634 = vmatprep.subr.mxu0 0.0
    %635 = vmatpush1.msra.mxu0 0.0
    %636 = vmatprep.subr.mxu0 0.0
    %637 = vmatpush1.msra.mxu0 0.0
    %638 = vmatprep.mubr.f32.mxu0 0.0
    %639 = vmatmul.mubr.f32.gmra.mrb[0].mxu0 %v501
    %v640 = vpop.f32.mrb[0].mxu0
    %v641 = vadd.f32 0.0, %v640
    %v642 = vpop.f32.mrb[0].mxu0
    %643 = vdwg.mxu0
    %v645 = vrot.slane %v570, 7
    %v648 = vadd.f32 %v211, %v645
    %v649 = vadd.f32 %v217, %v570
    %v650 = vxor.u32 %v648, 2147483648
    %v651 = vxor.u32 %v649, 2147483648
    %v652 = vmul.f32 %v650, 1.442695
    %v653 = vpow.pop %v652
    %v654 = vmul.f32 %v651, 1.442695
    %v655 = vpow.pop %v654
    %v656 = vadd.f32 %v653, 1.0
    %v657 = vadd.f32 %v655, 1.0
    %v658 = vrcp.pop %v656
    %v659 = vmul.f32 1.0, %v658
    %v660 = vrcp.pop %v657
    %v661 = vmul.f32 1.0, %v660
    %v663 = vrot.slane %v572, 7
    %v666 = vadd.f32 %v213, %v663
    %v667 = vadd.f32 %v219, %v572
    %v668 = vxor.u32 %v666, 2147483648
    %v669 = vxor.u32 %v667, 2147483648
    %v670 = vmul.f32 %v668, 1.442695
    %v671 = vpow.pop %v670
    %v672 = vmul.f32 %v669, 1.442695
    %v673 = vpow.pop %v672
    %v674 = vadd.f32 %v671, 1.0
    %v675 = vadd.f32 %v673, 1.0
    %v676 = vrcp.pop %v674
    %v677 = vmul.f32 1.0, %v676
    %v678 = vrcp.pop %v675
    %v679 = vmul.f32 1.0, %v678
    %v680 = vadd.f32 %v641, %v301
    %v682 = vrot.slane %v680, 7
    %v685 = vmul.f32 %v659, %v682
    %v686 = vmul.f32 %v661, %v680
    %v687 = vadd.f32 %v288, %v685
    %v688 = vadd.f32 %v293, %v686
    %v689 = vtanh.pop %v687
    %v690 = vtanh.pop %v688
    %v693 = vrot.slane %v689, 1
    %v694 = vrot.slane %v690, 1
    %v697 = vsub.f32 %v495, %v693
    %v698 = vsub.f32 %v496, %v694
    %v701 = vrot.slane %v697, 7
    %v702 = vrot.slane %v698, 7
    %v705 = vmul.f32 %v677, %v701
    %v706 = vmul.f32 %v679, %v702
    %v707 = vadd.f32 %v689, %v705
    %v708 = vadd.f32 %v690, %v706
    %v711 = vrot.slane %v707, 1
    %v712 = vsel %vm500, %v708, %v711
    %714 = vmatprep.subr.mxu0 %v46
    %715 = vmatpush1.msra.mxu0 %v45
    %716 = vmatprep.subr.mxu0 %v49
    %717 = vmatpush1.msra.mxu0 %v48
    %718 = vmatprep.subr.mxu0 %v52
    %719 = vmatpush1.msra.mxu0 %v51
    %720 = vmatprep.subr.mxu0 %v55
    %721 = vmatpush1.msra.mxu0 %v54
    %722 = vmatprep.subr.mxu0 %v58
    %723 = vmatpush1.msra.mxu0 %v57
    %724 = vmatprep.subr.mxu0 %v61
    %725 = vmatpush1.msra.mxu0 %v60
    %726 = vmatprep.subr.mxu0 %v64
    %727 = vmatpush1.msra.mxu0 %v63
    %728 = vmatprep.subr.mxu0 %v67
    %729 = vmatpush1.msra.mxu0 %v66
    %730 = vmatprep.subr.mxu0 %v70
    %731 = vmatpush1.msra.mxu0 %v69
    %732 = vmatprep.subr.mxu0 %v73
    %733 = vmatpush1.msra.mxu0 %v72
    %734 = vmatprep.subr.mxu0 %v76
    %735 = vmatpush1.msra.mxu0 %v75
    %736 = vmatprep.subr.mxu0 %v79
    %737 = vmatpush1.msra.mxu0 %v78
    %738 = vmatprep.subr.mxu0 %v82
    %739 = vmatpush1.msra.mxu0 %v81
    %740 = vmatprep.subr.mxu0 %v85
    %741 = vmatpush1.msra.mxu0 %v84
    %742 = vmatprep.subr.mxu0 %v88
    %743 = vmatpush1.msra.mxu0 %v87
    %744 = vmatprep.subr.mxu0 %v91
    %745 = vmatpush1.msra.mxu0 %v90
    %746 = vmatprep.subr.mxu0 0.0
    %747 = vmatpush1.msra.mxu0 0.0
    %748 = vmatprep.subr.mxu0 0.0
    %749 = vmatpush1.msra.mxu0 0.0
    %750 = vmatprep.subr.mxu0 0.0
    %751 = vmatpush1.msra.mxu0 0.0
    %752 = vmatprep.subr.mxu0 0.0
    %753 = vmatpush1.msra.mxu0 0.0
    %754 = vmatprep.subr.mxu0 0.0
    %755 = vmatpush1.msra.mxu0 0.0
    %756 = vmatprep.subr.mxu0 0.0
    %757 = vmatpush1.msra.mxu0 0.0
    %758 = vmatprep.subr.mxu0 0.0
    %759 = vmatpush1.msra.mxu0 0.0
    %760 = vmatprep.subr.mxu0 0.0
    %761 = vmatpush1.msra.mxu0 0.0
    %762 = vmatprep.subr.mxu0 0.0
    %763 = vmatpush1.msra.mxu0 0.0
    %764 = vmatprep.subr.mxu0 0.0
    %765 = vmatpush1.msra.mxu0 0.0
    %766 = vmatprep.subr.mxu0 0.0
    %767 = vmatpush1.msra.mxu0 0.0
    %768 = vmatprep.subr.mxu0 0.0
    %769 = vmatpush1.msra.mxu0 0.0
    %770 = vmatprep.subr.mxu0 0.0
    %771 = vmatpush1.msra.mxu0 0.0
    %772 = vmatprep.subr.mxu0 0.0
    %773 = vmatpush1.msra.mxu0 0.0
    %774 = vmatprep.subr.mxu0 0.0
    %775 = vmatpush1.msra.mxu0 0.0
    %776 = vmatprep.subr.mxu0 0.0
    %777 = vmatpush1.msra.mxu0 0.0
    %778 = vmatprep.mubr.f32.mxu0 0.0
    %779 = vmatmul.mubr.f32.gmra.mrb[0].mxu0 %v712
    %v780 = vpop.f32.mrb[0].mxu0
    %v781 = vadd.f32 0.0, %v780
    %v782 = vpop.f32.mrb[0].mxu0
    %v783 = vadd.f32 0.0, %v782
    %784 = vdwg.mxu0
    %785 = vmatprep.subr.mxu0 0.0
    %786 = vmatpush1.msra.mxu0 %v47
    %787 = vmatprep.subr.mxu0 0.0
    %788 = vmatpush1.msra.mxu0 %v50
    %789 = vmatprep.subr.mxu0 0.0
    %790 = vmatpush1.msra.mxu0 %v53
    %791 = vmatprep.subr.mxu0 0.0
    %792 = vmatpush1.msra.mxu0 %v56
    %793 = vmatprep.subr.mxu0 0.0
    %794 = vmatpush1.msra.mxu0 %v59
    %795 = vmatprep.subr.mxu0 0.0
    %796 = vmatpush1.msra.mxu0 %v62
    %797 = vmatprep.subr.mxu0 0.0
    %798 = vmatpush1.msra.mxu0 %v65
    %799 = vmatprep.subr.mxu0 0.0
    %800 = vmatpush1.msra.mxu0 %v68
    %801 = vmatprep.subr.mxu0 0.0
    %802 = vmatpush1.msra.mxu0 %v71
    %803 = vmatprep.subr.mxu0 0.0
    %804 = vmatpush1.msra.mxu0 %v74
    %805 = vmatprep.subr.mxu0 0.0
    %806 = vmatpush1.msra.mxu0 %v77
    %807 = vmatprep.subr.mxu0 0.0
    %808 = vmatpush1.msra.mxu0 %v80
    %809 = vmatprep.subr.mxu0 0.0
    %810 = vmatpush1.msra.mxu0 %v83
    %811 = vmatprep.subr.mxu0 0.0
    %812 = vmatpush1.msra.mxu0 %v86
    %813 = vmatprep.subr.mxu0 0.0
    %814 = vmatpush1.msra.mxu0 %v89
    %815 = vmatprep.subr.mxu0 0.0
    %816 = vmatpush1.msra.mxu0 %v92
    %817 = vmatprep.subr.mxu0 0.0
    %818 = vmatpush1.msra.mxu0 0.0
    %819 = vmatprep.subr.mxu0 0.0
    %820 = vmatpush1.msra.mxu0 0.0
    %821 = vmatprep.subr.mxu0 0.0
    %822 = vmatpush1.msra.mxu0 0.0
    %823 = vmatprep.subr.mxu0 0.0
    %824 = vmatpush1.msra.mxu0 0.0
    %825 = vmatprep.subr.mxu0 0.0
    %826 = vmatpush1.msra.mxu0 0.0
    %827 = vmatprep.subr.mxu0 0.0
    %828 = vmatpush1.msra.mxu0 0.0
    %829 = vmatprep.subr.mxu0 0.0
    %830 = vmatpush1.msra.mxu0 0.0
    %831 = vmatprep.subr.mxu0 0.0
    %832 = vmatpush1.msra.mxu0 0.0
    %833 = vmatprep.subr.mxu0 0.0
    %834 = vmatpush1.msra.mxu0 0.0
    %835 = vmatprep.subr.mxu0 0.0
    %836 = vmatpush1.msra.mxu0 0.0
    %837 = vmatprep.subr.mxu0 0.0
    %838 = vmatpush1.msra.mxu0 0.0
    %839 = vmatprep.subr.mxu0 0.0
    %840 = vmatpush1.msra.mxu0 0.0
    %841 = vmatprep.subr.mxu0 0.0
    %842 = vmatpush1.msra.mxu0 0.0
    %843 = vmatprep.subr.mxu0 0.0
    %844 = vmatpush1.msra.mxu0 0.0
    %845 = vmatprep.subr.mxu0 0.0
    %846 = vmatpush1.msra.mxu0 0.0
    %847 = vmatprep.subr.mxu0 0.0
    %848 = vmatpush1.msra.mxu0 0.0
    %849 = vmatprep.mubr.f32.mxu0 0.0
    %850 = vmatmul.mubr.f32.gmra.mrb[0].mxu0 %v712
    %v851 = vpop.f32.mrb[0].mxu0
    %v852 = vadd.f32 0.0, %v851
    %v853 = vpop.f32.mrb[0].mxu0
    %854 = vdwg.mxu0
    %v856 = vrot.slane %v781, 6
    %v857 = vrot.slane %v781, 7
    %v860 = vadd.f32 %v211, %v856
    %v861 = vadd.f32 %v217, %v857
    %v862 = vxor.u32 %v860, 2147483648
    %v863 = vxor.u32 %v861, 2147483648
    %v864 = vmul.f32 %v862, 1.442695
    %v865 = vpow.pop %v864
    %v866 = vmul.f32 %v863, 1.442695
    %v867 = vpow.pop %v866
    %v868 = vadd.f32 %v865, 1.0
    %v869 = vadd.f32 %v867, 1.0
    %v870 = vrcp.pop %v868
    %v871 = vmul.f32 1.0, %v870
    %v872 = vrcp.pop %v869
    %v873 = vmul.f32 1.0, %v872
    %v875 = vrot.slane %v783, 6
    %v876 = vrot.slane %v783, 7
    %v879 = vadd.f32 %v213, %v875
    %v880 = vadd.f32 %v219, %v876
    %v881 = vxor.u32 %v879, 2147483648
    %v882 = vxor.u32 %v880, 2147483648
    %v883 = vmul.f32 %v881, 1.442695
    %v884 = vpow.pop %v883
    %v885 = vmul.f32 %v882, 1.442695
    %v886 = vpow.pop %v885
    %v887 = vadd.f32 %v884, 1.0
    %v888 = vadd.f32 %v886, 1.0
    %v889 = vrcp.pop %v887
    %v890 = vmul.f32 1.0, %v889
    %v891 = vrcp.pop %v888
    %v892 = vmul.f32 1.0, %v891
    %v893 = vadd.f32 %v852, %v301
    %v895 = vrot.slane %v893, 6
    %v896 = vrot.slane %v893, 7
    %v899 = vmul.f32 %v871, %v895
    %v900 = vmul.f32 %v873, %v896
    %v901 = vadd.f32 %v288, %v899
    %v902 = vadd.f32 %v293, %v900
    %v903 = vtanh.pop %v901
    %v904 = vtanh.pop %v902
    %v907 = vrot.slane %v903, 1
    %v908 = vrot.slane %v904, 1
    %v911 = vsub.f32 %v707, %v907
    %v912 = vsub.f32 %v708, %v908
    %v915 = vrot.slane %v911, 7
    %v916 = vrot.slane %v912, 7
    %v919 = vmul.f32 %v890, %v915
    %v920 = vmul.f32 %v892, %v916
    %v921 = vadd.f32 %v903, %v919
    %v922 = vadd.f32 %v904, %v920
    %v925 = vrot.slane %v921, 2
    %v926 = vrot.slane %v922, 1
    %v927 = vsel %vm500, %v926, %v925
    %929 = vmatprep.subr.mxu0 %v46
    %930 = vmatpush1.msra.mxu0 %v45
    %931 = vmatprep.subr.mxu0 %v49
    %932 = vmatpush1.msra.mxu0 %v48
    %933 = vmatprep.subr.mxu0 %v52
    %934 = vmatpush1.msra.mxu0 %v51
    %935 = vmatprep.subr.mxu0 %v55
    %936 = vmatpush1.msra.mxu0 %v54
    %937 = vmatprep.subr.mxu0 %v58
    %938 = vmatpush1.msra.mxu0 %v57
    %939 = vmatprep.subr.mxu0 %v61
    %940 = vmatpush1.msra.mxu0 %v60
    %941 = vmatprep.subr.mxu0 %v64
    %942 = vmatpush1.msra.mxu0 %v63
    %943 = vmatprep.subr.mxu0 %v67
    %944 = vmatpush1.msra.mxu0 %v66
    %945 = vmatprep.subr.mxu0 %v70
    %946 = vmatpush1.msra.mxu0 %v69
    %947 = vmatprep.subr.mxu0 %v73
    %948 = vmatpush1.msra.mxu0 %v72
    %949 = vmatprep.subr.mxu0 %v76
    %950 = vmatpush1.msra.mxu0 %v75
    %951 = vmatprep.subr.mxu0 %v79
    %952 = vmatpush1.msra.mxu0 %v78
    %953 = vmatprep.subr.mxu0 %v82
    %954 = vmatpush1.msra.mxu0 %v81
    %955 = vmatprep.subr.mxu0 %v85
    %956 = vmatpush1.msra.mxu0 %v84
    %957 = vmatprep.subr.mxu0 %v88
    %958 = vmatpush1.msra.mxu0 %v87
    %959 = vmatprep.subr.mxu0 %v91
    %960 = vmatpush1.msra.mxu0 %v90
    %961 = vmatprep.subr.mxu0 0.0
    %962 = vmatpush1.msra.mxu0 0.0
    %963 = vmatprep.subr.mxu0 0.0
    %964 = vmatpush1.msra.mxu0 0.0
    %965 = vmatprep.subr.mxu0 0.0
    %966 = vmatpush1.msra.mxu0 0.0
    %967 = vmatprep.subr.mxu0 0.0
    %968 = vmatpush1.msra.mxu0 0.0
    %969 = vmatprep.subr.mxu0 0.0
    %970 = vmatpush1.msra.mxu0 0.0
    %971 = vmatprep.subr.mxu0 0.0
    %972 = vmatpush1.msra.mxu0 0.0
    %973 = vmatprep.subr.mxu0 0.0
    %974 = vmatpush1.msra.mxu0 0.0
    %975 = vmatprep.subr.mxu0 0.0
    %976 = vmatpush1.msra.mxu0 0.0
    %977 = vmatprep.subr.mxu0 0.0
    %978 = vmatpush1.msra.mxu0 0.0
    %979 = vmatprep.subr.mxu0 0.0
    %980 = vmatpush1.msra.mxu0 0.0
    %981 = vmatprep.subr.mxu0 0.0
    %982 = vmatpush1.msra.mxu0 0.0
    %983 = vmatprep.subr.mxu0 0.0
    %984 = vmatpush1.msra.mxu0 0.0
    %985 = vmatprep.subr.mxu0 0.0
    %986 = vmatpush1.msra.mxu0 0.0
    %987 = vmatprep.subr.mxu0 0.0
    %988 = vmatpush1.msra.mxu0 0.0
    %989 = vmatprep.subr.mxu0 0.0
    %990 = vmatpush1.msra.mxu0 0.0
    %991 = vmatprep.subr.mxu0 0.0
    %992 = vmatpush1.msra.mxu0 0.0
    %993 = vmatprep.mubr.f32.mxu0 0.0
    %994 = vmatmul.mubr.f32.gmra.mrb[0].mxu0 %v927
    %v995 = vpop.f32.mrb[0].mxu0
    %v996 = vadd.f32 0.0, %v995
    %v997 = vpop.f32.mrb[0].mxu0
    %v998 = vadd.f32 0.0, %v997
    %999 = vdwg.mxu0
    %1000 = vmatprep.subr.mxu0 0.0
    %1001 = vmatpush1.msra.mxu0 %v47
    %1002 = vmatprep.subr.mxu0 0.0
    %1003 = vmatpush1.msra.mxu0 %v50
    %1004 = vmatprep.subr.mxu0 0.0
    %1005 = vmatpush1.msra.mxu0 %v53
    %1006 = vmatprep.subr.mxu0 0.0
    %1007 = vmatpush1.msra.mxu0 %v56
    %1008 = vmatprep.subr.mxu0 0.0
    %1009 = vmatpush1.msra.mxu0 %v59
    %1010 = vmatprep.subr.mxu0 0.0
    %1011 = vmatpush1.msra.mxu0 %v62
    %1012 = vmatprep.subr.mxu0 0.0
    %1013 = vmatpush1.msra.mxu0 %v65
    %1014 = vmatprep.subr.mxu0 0.0
    %1015 = vmatpush1.msra.mxu0 %v68
    %1016 = vmatprep.subr.mxu0 0.0
    %1017 = vmatpush1.msra.mxu0 %v71
    %1018 = vmatprep.subr.mxu0 0.0
    %1019 = vmatpush1.msra.mxu0 %v74
    %1020 = vmatprep.subr.mxu0 0.0
    %1021 = vmatpush1.msra.mxu0 %v77
    %1022 = vmatprep.subr.mxu0 0.0
    %1023 = vmatpush1.msra.mxu0 %v80
    %1024 = vmatprep.subr.mxu0 0.0
    %1025 = vmatpush1.msra.mxu0 %v83
    %1026 = vmatprep.subr.mxu0 0.0
    %1027 = vmatpush1.msra.mxu0 %v86
    %1028 = vmatprep.subr.mxu0 0.0
    %1029 = vmatpush1.msra.mxu0 %v89
    %1030 = vmatprep.subr.mxu0 0.0
    %1031 = vmatpush1.msra.mxu0 %v92
    %1032 = vmatprep.subr.mxu0 0.0
    %1033 = vmatpush1.msra.mxu0 0.0
    %1034 = vmatprep.subr.mxu0 0.0
    %1035 = vmatpush1.msra.mxu0 0.0
    %1036 = vmatprep.subr.mxu0 0.0
    %1037 = vmatpush1.msra.mxu0 0.0
    %1038 = vmatprep.subr.mxu0 0.0
    %1039 = vmatpush1.msra.mxu0 0.0
    %1040 = vmatprep.subr.mxu0 0.0
    %1041 = vmatpush1.msra.mxu0 0.0
    %1042 = vmatprep.subr.mxu0 0.0
    %1043 = vmatpush1.msra.mxu0 0.0
    %1044 = vmatprep.subr.mxu0 0.0
    %1045 = vmatpush1.msra.mxu0 0.0
    %1046 = vmatprep.subr.mxu0 0.0
    %1047 = vmatpush1.msra.mxu0 0.0
    %1048 = vmatprep.subr.mxu0 0.0
    %1049 = vmatpush1.msra.mxu0 0.0
    %1050 = vmatprep.subr.mxu0 0.0
    %1051 = vmatpush1.msra.mxu0 0.0
    %1052 = vmatprep.subr.mxu0 0.0
    %1053 = vmatpush1.msra.mxu0 0.0
    %1054 = vmatprep.subr.mxu0 0.0
    %1055 = vmatpush1.msra.mxu0 0.0
    %1056 = vmatprep.subr.mxu0 0.0
    %1057 = vmatpush1.msra.mxu0 0.0
    %1058 = vmatprep.subr.mxu0 0.0
    %1059 = vmatpush1.msra.mxu0 0.0
    %1060 = vmatprep.subr.mxu0 0.0
    %1061 = vmatpush1.msra.mxu0 0.0
    %1062 = vmatprep.subr.mxu0 0.0
    %1063 = vmatpush1.msra.mxu0 0.0
    %1064 = vmatprep.mubr.f32.mxu0 0.0
    %1065 = vmatmul.mubr.f32.gmra.mrb[0].mxu0 %v927
    %v1066 = vpop.f32.mrb[0].mxu0
    %v1067 = vadd.f32 0.0, %v1066
    %v1068 = vpop.f32.mrb[0].mxu0
    %1069 = vdwg.mxu0
    %v1071 = vrot.slane %v996, 5
    %v1072 = vrot.slane %v996, 6
    %v1075 = vadd.f32 %v211, %v1071
    %v1076 = vadd.f32 %v217, %v1072
    %v1077 = vxor.u32 %v1075, 2147483648
    %v1078 = vxor.u32 %v1076, 2147483648
    %v1079 = vmul.f32 %v1077, 1.442695
    %v1080 = vpow.pop %v1079
    %v1081 = vmul.f32 %v1078, 1.442695
    %v1082 = vpow.pop %v1081
    %v1083 = vadd.f32 %v1080, 1.0
    %v1084 = vadd.f32 %v1082, 1.0
    %v1085 = vrcp.pop %v1083
    %v1086 = vmul.f32 1.0, %v1085
    %v1087 = vrcp.pop %v1084
    %v1088 = vmul.f32 1.0, %v1087
    %v1090 = vrot.slane %v998, 5
    %v1091 = vrot.slane %v998, 6
    %v1094 = vadd.f32 %v213, %v1090
    %v1095 = vadd.f32 %v219, %v1091
    %v1096 = vxor.u32 %v1094, 2147483648
    %v1097 = vxor.u32 %v1095, 2147483648
    %v1098 = vmul.f32 %v1096, 1.442695
    %v1099 = vpow.pop %v1098
    %v1100 = vmul.f32 %v1097, 1.442695
    %v1101 = vpow.pop %v1100
    %v1102 = vadd.f32 %v1099, 1.0
    %v1103 = vadd.f32 %v1101, 1.0
    %v1104 = vrcp.pop %v1102
    %v1105 = vmul.f32 1.0, %v1104
    %v1106 = vrcp.pop %v1103
    %v1107 = vmul.f32 1.0, %v1106
    %v1108 = vadd.f32 %v1067, %v301
    %v1110 = vrot.slane %v1108, 5
    %v1111 = vrot.slane %v1108, 6
    %v1114 = vmul.f32 %v1086, %v1110
    %v1115 = vmul.f32 %v1088, %v1111
    %v1116 = vadd.f32 %v288, %v1114
    %v1117 = vadd.f32 %v293, %v1115
    %v1118 = vtanh.pop %v1116
    %v1119 = vtanh.pop %v1117
    %v1122 = vrot.slane %v1118, 1
    %v1123 = vrot.slane %v1119, 1
    %v1126 = vsub.f32 %v921, %v1122
    %v1127 = vsub.f32 %v922, %v1123
    %v1130 = vrot.slane %v1126, 7
    %v1131 = vrot.slane %v1127, 7
    %v1134 = vmul.f32 %v1105, %v1130
    %v1135 = vmul.f32 %v1107, %v1131
    %v1136 = vadd.f32 %v1118, %v1134
    %v1137 = vadd.f32 %v1119, %v1135
    %v1140 = vrot.slane %v1136, 3
    %v1141 = vrot.slane %v1137, 2
    %v1142 = vsel %vm500, %v1141, %v1140
    %1144 = vmatprep.subr.mxu0 %v46
    %1145 = vmatpush1.msra.mxu0 %v45
    %1146 = vmatprep.subr.mxu0 %v49
    %1147 = vmatpush1.msra.mxu0 %v48
    %1148 = vmatprep.subr.mxu0 %v52
    %1149 = vmatpush1.msra.mxu0 %v51
    %1150 = vmatprep.subr.mxu0 %v55
    %1151 = vmatpush1.msra.mxu0 %v54
    %1152 = vmatprep.subr.mxu0 %v58
    %1153 = vmatpush1.msra.mxu0 %v57
    %1154 = vmatprep.subr.mxu0 %v61
    %1155 = vmatpush1.msra.mxu0 %v60
    %1156 = vmatprep.subr.mxu0 %v64
    %1157 = vmatpush1.msra.mxu0 %v63
    %1158 = vmatprep.subr.mxu0 %v67
    %1159 = vmatpush1.msra.mxu0 %v66
    %1160 = vmatprep.subr.mxu0 %v70
    %1161 = vmatpush1.msra.mxu0 %v69
    %1162 = vmatprep.subr.mxu0 %v73
    %1163 = vmatpush1.msra.mxu0 %v72
    %1164 = vmatprep.subr.mxu0 %v76
    %1165 = vmatpush1.msra.mxu0 %v75
    %1166 = vmatprep.subr.mxu0 %v79
    %1167 = vmatpush1.msra.mxu0 %v78
    %1168 = vmatprep.subr.mxu0 %v82
    %1169 = vmatpush1.msra.mxu0 %v81
    %1170 = vmatprep.subr.mxu0 %v85
    %1171 = vmatpush1.msra.mxu0 %v84
    %1172 = vmatprep.subr.mxu0 %v88
    %1173 = vmatpush1.msra.mxu0 %v87
    %1174 = vmatprep.subr.mxu0 %v91
    %1175 = vmatpush1.msra.mxu0 %v90
    %1176 = vmatprep.subr.mxu0 0.0
    %1177 = vmatpush1.msra.mxu0 0.0
    %1178 = vmatprep.subr.mxu0 0.0
    %1179 = vmatpush1.msra.mxu0 0.0
    %1180 = vmatprep.subr.mxu0 0.0
    %1181 = vmatpush1.msra.mxu0 0.0
    %1182 = vmatprep.subr.mxu0 0.0
    %1183 = vmatpush1.msra.mxu0 0.0
    %1184 = vmatprep.subr.mxu0 0.0
    %1185 = vmatpush1.msra.mxu0 0.0
    %1186 = vmatprep.subr.mxu0 0.0
    %1187 = vmatpush1.msra.mxu0 0.0
    %1188 = vmatprep.subr.mxu0 0.0
    %1189 = vmatpush1.msra.mxu0 0.0
    %1190 = vmatprep.subr.mxu0 0.0
    %1191 = vmatpush1.msra.mxu0 0.0
    %1192 = vmatprep.subr.mxu0 0.0
    %1193 = vmatpush1.msra.mxu0 0.0
    %1194 = vmatprep.subr.mxu0 0.0
    %1195 = vmatpush1.msra.mxu0 0.0
    %1196 = vmatprep.subr.mxu0 0.0
    %1197 = vmatpush1.msra.mxu0 0.0
    %1198 = vmatprep.subr.mxu0 0.0
    %1199 = vmatpush1.msra.mxu0 0.0
    %1200 = vmatprep.subr.mxu0 0.0
    %1201 = vmatpush1.msra.mxu0 0.0
    %1202 = vmatprep.subr.mxu0 0.0
    %1203 = vmatpush1.msra.mxu0 0.0
    %1204 = vmatprep.subr.mxu0 0.0
    %1205 = vmatpush1.msra.mxu0 0.0
    %1206 = vmatprep.subr.mxu0 0.0
    %1207 = vmatpush1.msra.mxu0 0.0
    %1208 = vmatprep.mubr.f32.mxu0 0.0
    %1209 = vmatmul.mubr.f32.gmra.mrb[0].mxu0 %v1142
    %v1210 = vpop.f32.mrb[0].mxu0
    %v1211 = vadd.f32 0.0, %v1210
    %v1212 = vpop.f32.mrb[0].mxu0
    %v1213 = vadd.f32 0.0, %v1212
    %1214 = vdwg.mxu0
    %1215 = vmatprep.subr.mxu0 0.0
    %1216 = vmatpush1.msra.mxu0 %v47
    %1217 = vmatprep.subr.mxu0 0.0
    %1218 = vmatpush1.msra.mxu0 %v50
    %1219 = vmatprep.subr.mxu0 0.0
    %1220 = vmatpush1.msra.mxu0 %v53
    %1221 = vmatprep.subr.mxu0 0.0
    %1222 = vmatpush1.msra.mxu0 %v56
    %1223 = vmatprep.subr.mxu0 0.0
    %1224 = vmatpush1.msra.mxu0 %v59
    %1225 = vmatprep.subr.mxu0 0.0
    %1226 = vmatpush1.msra.mxu0 %v62
    %1227 = vmatprep.subr.mxu0 0.0
    %1228 = vmatpush1.msra.mxu0 %v65
    %1229 = vmatprep.subr.mxu0 0.0
    %1230 = vmatpush1.msra.mxu0 %v68
    %1231 = vmatprep.subr.mxu0 0.0
    %1232 = vmatpush1.msra.mxu0 %v71
    %1233 = vmatprep.subr.mxu0 0.0
    %1234 = vmatpush1.msra.mxu0 %v74
    %1235 = vmatprep.subr.mxu0 0.0
    %1236 = vmatpush1.msra.mxu0 %v77
    %1237 = vmatprep.subr.mxu0 0.0
    %1238 = vmatpush1.msra.mxu0 %v80
    %1239 = vmatprep.subr.mxu0 0.0
    %1240 = vmatpush1.msra.mxu0 %v83
    %1241 = vmatprep.subr.mxu0 0.0
    %1242 = vmatpush1.msra.mxu0 %v86
    %1243 = vmatprep.subr.mxu0 0.0
    %1244 = vmatpush1.msra.mxu0 %v89
    %1245 = vmatprep.subr.mxu0 0.0
    %1246 = vmatpush1.msra.mxu0 %v92
    %1247 = vmatprep.subr.mxu0 0.0
    %1248 = vmatpush1.msra.mxu0 0.0
    %1249 = vmatprep.subr.mxu0 0.0
    %1250 = vmatpush1.msra.mxu0 0.0
    %1251 = vmatprep.subr.mxu0 0.0
    %1252 = vmatpush1.msra.mxu0 0.0
    %1253 = vmatprep.subr.mxu0 0.0
    %1254 = vmatpush1.msra.mxu0 0.0
    %1255 = vmatprep.subr.mxu0 0.0
    %1256 = vmatpush1.msra.mxu0 0.0
    %1257 = vmatprep.subr.mxu0 0.0
    %1258 = vmatpush1.msra.mxu0 0.0
    %1259 = vmatprep.subr.mxu0 0.0
    %1260 = vmatpush1.msra.mxu0 0.0
    %1261 = vmatprep.subr.mxu0 0.0
    %1262 = vmatpush1.msra.mxu0 0.0
    %1263 = vmatprep.subr.mxu0 0.0
    %1264 = vmatpush1.msra.mxu0 0.0
    %1265 = vmatprep.subr.mxu0 0.0
    %1266 = vmatpush1.msra.mxu0 0.0
    %1267 = vmatprep.subr.mxu0 0.0
    %1268 = vmatpush1.msra.mxu0 0.0
    %1269 = vmatprep.subr.mxu0 0.0
    %1270 = vmatpush1.msra.mxu0 0.0
    %1271 = vmatprep.subr.mxu0 0.0
    %1272 = vmatpush1.msra.mxu0 0.0
    %1273 = vmatprep.subr.mxu0 0.0
    %1274 = vmatpush1.msra.mxu0 0.0
    %1275 = vmatprep.subr.mxu0 0.0
    %1276 = vmatpush1.msra.mxu0 0.0
    %1277 = vmatprep.subr.mxu0 0.0
    %1278 = vmatpush1.msra.mxu0 0.0
    %1279 = vmatprep.mubr.f32.mxu0 0.0
    %1280 = vmatmul.mubr.f32.gmra.mrb[0].mxu0 %v1142
    %v1281 = vpop.f32.mrb[0].mxu0
    %v1282 = vadd.f32 0.0, %v1281
    %v1283 = vpop.f32.mrb[0].mxu0
    %1284 = vdwg.mxu0
    %v1286 = vrot.slane %v1211, 4
    %v1287 = vrot.slane %v1211, 5
    %v1290 = vadd.f32 %v211, %v1286
    %v1291 = vadd.f32 %v217, %v1287
    %v1292 = vxor.u32 %v1290, 2147483648
    %v1293 = vxor.u32 %v1291, 2147483648
    %v1294 = vmul.f32 %v1292, 1.442695
    %v1295 = vpow.pop %v1294
    %v1296 = vmul.f32 %v1293, 1.442695
    %v1297 = vpow.pop %v1296
    %v1298 = vadd.f32 %v1295, 1.0
    %v1299 = vadd.f32 %v1297, 1.0
    %v1300 = vrcp.pop %v1298
    %v1301 = vmul.f32 1.0, %v1300
    %v1302 = vrcp.pop %v1299
    %v1303 = vmul.f32 1.0, %v1302
    %v1305 = vrot.slane %v1213, 4
    %v1306 = vrot.slane %v1213, 5
    %v1309 = vadd.f32 %v213, %v1305
    %v1310 = vadd.f32 %v219, %v1306
    %v1311 = vxor.u32 %v1309, 2147483648
    %v1312 = vxor.u32 %v1310, 2147483648
    %v1313 = vmul.f32 %v1311, 1.442695
    %v1314 = vpow.pop %v1313
    %v1315 = vmul.f32 %v1312, 1.442695
    %v1316 = vpow.pop %v1315
    %v1317 = vadd.f32 %v1314, 1.0
    %v1318 = vadd.f32 %v1316, 1.0
    %v1319 = vrcp.pop %v1317
    %v1320 = vmul.f32 1.0, %v1319
    %v1321 = vrcp.pop %v1318
    %v1322 = vmul.f32 1.0, %v1321
    %v1323 = vadd.f32 %v1282, %v301
    %v1325 = vrot.slane %v1323, 4
    %v1326 = vrot.slane %v1323, 5
    %v1329 = vmul.f32 %v1301, %v1325
    %v1330 = vmul.f32 %v1303, %v1326
    %v1331 = vadd.f32 %v288, %v1329
    %v1332 = vadd.f32 %v293, %v1330
    %v1333 = vtanh.pop %v1331
    %v1334 = vtanh.pop %v1332
    %v1337 = vrot.slane %v1333, 1
    %v1338 = vrot.slane %v1334, 1
    %v1341 = vsub.f32 %v1136, %v1337
    %v1342 = vsub.f32 %v1137, %v1338
    %v1345 = vrot.slane %v1341, 7
    %v1346 = vrot.slane %v1342, 7
    %v1349 = vmul.f32 %v1320, %v1345
    %v1350 = vmul.f32 %v1322, %v1346
    %v1351 = vadd.f32 %v1333, %v1349
    %v1352 = vadd.f32 %v1334, %v1350
    %v1355 = vrot.slane %v1351, 4
    %v1356 = vrot.slane %v1352, 3
    %v1357 = vsel %vm500, %v1356, %v1355
    %1359 = vmatprep.subr.mxu0 %v46
    %1360 = vmatpush1.msra.mxu0 %v45
    %1361 = vmatprep.subr.mxu0 %v49
    %1362 = vmatpush1.msra.mxu0 %v48
    %1363 = vmatprep.subr.mxu0 %v52
    %1364 = vmatpush1.msra.mxu0 %v51
    %1365 = vmatprep.subr.mxu0 %v55
    %1366 = vmatpush1.msra.mxu0 %v54
    %1367 = vmatprep.subr.mxu0 %v58
    %1368 = vmatpush1.msra.mxu0 %v57
    %1369 = vmatprep.subr.mxu0 %v61
    %1370 = vmatpush1.msra.mxu0 %v60
    %1371 = vmatprep.subr.mxu0 %v64
    %1372 = vmatpush1.msra.mxu0 %v63
    %1373 = vmatprep.subr.mxu0 %v67
    %1374 = vmatpush1.msra.mxu0 %v66
    %1375 = vmatprep.subr.mxu0 %v70
    %1376 = vmatpush1.msra.mxu0 %v69
    %1377 = vmatprep.subr.mxu0 %v73
    %1378 = vmatpush1.msra.mxu0 %v72
    %1379 = vmatprep.subr.mxu0 %v76
    %1380 = vmatpush1.msra.mxu0 %v75
    %1381 = vmatprep.subr.mxu0 %v79
    %1382 = vmatpush1.msra.mxu0 %v78
    %1383 = vmatprep.subr.mxu0 %v82
    %1384 = vmatpush1.msra.mxu0 %v81
    %1385 = vmatprep.subr.mxu0 %v85
    %1386 = vmatpush1.msra.mxu0 %v84
    %1387 = vmatprep.subr.mxu0 %v88
    %1388 = vmatpush1.msra.mxu0 %v87
    %1389 = vmatprep.subr.mxu0 %v91
    %1390 = vmatpush1.msra.mxu0 %v90
    %1391 = vmatprep.subr.mxu0 0.0
    %1392 = vmatpush1.msra.mxu0 0.0
    %1393 = vmatprep.subr.mxu0 0.0
    %1394 = vmatpush1.msra.mxu0 0.0
    %1395 = vmatprep.subr.mxu0 0.0
    %1396 = vmatpush1.msra.mxu0 0.0
    %1397 = vmatprep.subr.mxu0 0.0
    %1398 = vmatpush1.msra.mxu0 0.0
    %1399 = vmatprep.subr.mxu0 0.0
    %1400 = vmatpush1.msra.mxu0 0.0
    %1401 = vmatprep.subr.mxu0 0.0
    %1402 = vmatpush1.msra.mxu0 0.0
    %1403 = vmatprep.subr.mxu0 0.0
    %1404 = vmatpush1.msra.mxu0 0.0
    %1405 = vmatprep.subr.mxu0 0.0
    %1406 = vmatpush1.msra.mxu0 0.0
    %1407 = vmatprep.subr.mxu0 0.0
    %1408 = vmatpush1.msra.mxu0 0.0
    %1409 = vmatprep.subr.mxu0 0.0
    %1410 = vmatpush1.msra.mxu0 0.0
    %1411 = vmatprep.subr.mxu0 0.0
    %1412 = vmatpush1.msra.mxu0 0.0
    %1413 = vmatprep.subr.mxu0 0.0
    %1414 = vmatpush1.msra.mxu0 0.0
    %1415 = vmatprep.subr.mxu0 0.0
    %1416 = vmatpush1.msra.mxu0 0.0
    %1417 = vmatprep.subr.mxu0 0.0
    %1418 = vmatpush1.msra.mxu0 0.0
    %1419 = vmatprep.subr.mxu0 0.0
    %1420 = vmatpush1.msra.mxu0 0.0
    %1421 = vmatprep.subr.mxu0 0.0
    %1422 = vmatpush1.msra.mxu0 0.0
    %1423 = vmatprep.mubr.f32.mxu0 0.0
    %1424 = vmatmul.mubr.f32.gmra.mrb[0].mxu0 %v1357
    %v1425 = vpop.f32.mrb[0].mxu0
    %v1426 = vadd.f32 0.0, %v1425
    %v1427 = vpop.f32.mrb[0].mxu0
    %v1428 = vadd.f32 0.0, %v1427
    %1429 = vdwg.mxu0
    %1430 = vmatprep.subr.mxu0 0.0
    %1431 = vmatpush1.msra.mxu0 %v47
    %1432 = vmatprep.subr.mxu0 0.0
    %1433 = vmatpush1.msra.mxu0 %v50
    %1434 = vmatprep.subr.mxu0 0.0
    %1435 = vmatpush1.msra.mxu0 %v53
    %1436 = vmatprep.subr.mxu0 0.0
    %1437 = vmatpush1.msra.mxu0 %v56
    %1438 = vmatprep.subr.mxu0 0.0
    %1439 = vmatpush1.msra.mxu0 %v59
    %1440 = vmatprep.subr.mxu0 0.0
    %1441 = vmatpush1.msra.mxu0 %v62
    %1442 = vmatprep.subr.mxu0 0.0
    %1443 = vmatpush1.msra.mxu0 %v65
    %1444 = vmatprep.subr.mxu0 0.0
    %1445 = vmatpush1.msra.mxu0 %v68
    %1446 = vmatprep.subr.mxu0 0.0
    %1447 = vmatpush1.msra.mxu0 %v71
    %1448 = vmatprep.subr.mxu0 0.0
    %1449 = vmatpush1.msra.mxu0 %v74
    %1450 = vmatprep.subr.mxu0 0.0
    %1451 = vmatpush1.msra.mxu0 %v77
    %1452 = vmatprep.subr.mxu0 0.0
    %1453 = vmatpush1.msra.mxu0 %v80
    %1454 = vmatprep.subr.mxu0 0.0
    %1455 = vmatpush1.msra.mxu0 %v83
    %1456 = vmatprep.subr.mxu0 0.0
    %1457 = vmatpush1.msra.mxu0 %v86
    %1458 = vmatprep.subr.mxu0 0.0
    %1459 = vmatpush1.msra.mxu0 %v89
    %1460 = vmatprep.subr.mxu0 0.0
    %1461 = vmatpush1.msra.mxu0 %v92
    %1462 = vmatprep.subr.mxu0 0.0
    %1463 = vmatpush1.msra.mxu0 0.0
    %1464 = vmatprep.subr.mxu0 0.0
    %1465 = vmatpush1.msra.mxu0 0.0
    %1466 = vmatprep.subr.mxu0 0.0
    %1467 = vmatpush1.msra.mxu0 0.0
    %1468 = vmatprep.subr.mxu0 0.0
    %1469 = vmatpush1.msra.mxu0 0.0
    %1470 = vmatprep.subr.mxu0 0.0
    %1471 = vmatpush1.msra.mxu0 0.0
    %1472 = vmatprep.subr.mxu0 0.0
    %1473 = vmatpush1.msra.mxu0 0.0
    %1474 = vmatprep.subr.mxu0 0.0
    %1475 = vmatpush1.msra.mxu0 0.0
    %1476 = vmatprep.subr.mxu0 0.0
    %1477 = vmatpush1.msra.mxu0 0.0
    %1478 = vmatprep.subr.mxu0 0.0
    %1479 = vmatpush1.msra.mxu0 0.0
    %1480 = vmatprep.subr.mxu0 0.0
    %1481 = vmatpush1.msra.mxu0 0.0
    %1482 = vmatprep.subr.mxu0 0.0
    %1483 = vmatpush1.msra.mxu0 0.0
    %1484 = vmatprep.subr.mxu0 0.0
    %1485 = vmatpush1.msra.mxu0 0.0
    %1486 = vmatprep.subr.mxu0 0.0
    %1487 = vmatpush1.msra.mxu0 0.0
    %1488 = vmatprep.subr.mxu0 0.0
    %1489 = vmatpush1.msra.mxu0 0.0
    %1490 = vmatprep.subr.mxu0 0.0
    %1491 = vmatpush1.msra.mxu0 0.0
    %1492 = vmatprep.subr.mxu0 0.0
    %1493 = vmatpush1.msra.mxu0 0.0
    %1494 = vmatprep.mubr.f32.mxu0 0.0
    %1495 = vmatmul.mubr.f32.gmra.mrb[0].mxu0 %v1357
    %v1496 = vpop.f32.mrb[0].mxu0
    %v1497 = vadd.f32 0.0, %v1496
    %v1498 = vpop.f32.mrb[0].mxu0
    %1499 = vdwg.mxu0
    %v1501 = vrot.slane %v1426, 3
    %v1502 = vrot.slane %v1426, 4
    %v1505 = vadd.f32 %v211, %v1501
    %v1506 = vadd.f32 %v217, %v1502
    %v1507 = vxor.u32 %v1505, 2147483648
    %v1508 = vxor.u32 %v1506, 2147483648
    %v1509 = vmul.f32 %v1507, 1.442695
    %v1510 = vpow.pop %v1509
    %v1511 = vmul.f32 %v1508, 1.442695
    %v1512 = vpow.pop %v1511
    %v1513 = vadd.f32 %v1510, 1.0
    %v1514 = vadd.f32 %v1512, 1.0
    %v1515 = vrcp.pop %v1513
    %v1516 = vmul.f32 1.0, %v1515
    %v1517 = vrcp.pop %v1514
    %v1518 = vmul.f32 1.0, %v1517
    %v1520 = vrot.slane %v1428, 3
    %v1521 = vrot.slane %v1428, 4
    %v1524 = vadd.f32 %v213, %v1520
    %v1525 = vadd.f32 %v219, %v1521
    %v1526 = vxor.u32 %v1524, 2147483648
    %v1527 = vxor.u32 %v1525, 2147483648
    %v1528 = vmul.f32 %v1526, 1.442695
    %v1529 = vpow.pop %v1528
    %v1530 = vmul.f32 %v1527, 1.442695
    %v1531 = vpow.pop %v1530
    %v1532 = vadd.f32 %v1529, 1.0
    %v1533 = vadd.f32 %v1531, 1.0
    %v1534 = vrcp.pop %v1532
    %v1535 = vmul.f32 1.0, %v1534
    %v1536 = vrcp.pop %v1533
    %v1537 = vmul.f32 1.0, %v1536
    %v1538 = vadd.f32 %v1497, %v301
    %v1540 = vrot.slane %v1538, 3
    %v1541 = vrot.slane %v1538, 4
    %v1544 = vmul.f32 %v1516, %v1540
    %v1545 = vmul.f32 %v1518, %v1541
    %v1546 = vadd.f32 %v288, %v1544
    %v1547 = vadd.f32 %v293, %v1545
    %v1548 = vtanh.pop %v1546
    %v1549 = vtanh.pop %v1547
    %v1552 = vrot.slane %v1548, 1
    %v1553 = vrot.slane %v1549, 1
    %v1556 = vsub.f32 %v1351, %v1552
    %v1557 = vsub.f32 %v1352, %v1553
    %v1560 = vrot.slane %v1556, 7
    %v1561 = vrot.slane %v1557, 7
    %v1564 = vmul.f32 %v1535, %v1560
    %v1565 = vmul.f32 %v1537, %v1561
    %v1566 = vadd.f32 %v1548, %v1564
    %v1567 = vadd.f32 %v1549, %v1565
    %v1570 = vrot.slane %v1566, 5
    %v1571 = vrot.slane %v1567, 4
    %v1572 = vsel %vm500, %v1571, %v1570
    %1574 = vmatprep.subr.mxu0 %v46
    %1575 = vmatpush1.msra.mxu0 %v45
    %1576 = vmatprep.subr.mxu0 %v49
    %1577 = vmatpush1.msra.mxu0 %v48
    %1578 = vmatprep.subr.mxu0 %v52
    %1579 = vmatpush1.msra.mxu0 %v51
    %1580 = vmatprep.subr.mxu0 %v55
    %1581 = vmatpush1.msra.mxu0 %v54
    %1582 = vmatprep.subr.mxu0 %v58
    %1583 = vmatpush1.msra.mxu0 %v57
    %1584 = vmatprep.subr.mxu0 %v61
    %1585 = vmatpush1.msra.mxu0 %v60
    %1586 = vmatprep.subr.mxu0 %v64
    %1587 = vmatpush1.msra.mxu0 %v63
    %1588 = vmatprep.subr.mxu0 %v67
    %1589 = vmatpush1.msra.mxu0 %v66
    %1590 = vmatprep.subr.mxu0 %v70
    %1591 = vmatpush1.msra.mxu0 %v69
    %1592 = vmatprep.subr.mxu0 %v73
    %1593 = vmatpush1.msra.mxu0 %v72
    %1594 = vmatprep.subr.mxu0 %v76
    %1595 = vmatpush1.msra.mxu0 %v75
    %1596 = vmatprep.subr.mxu0 %v79
    %1597 = vmatpush1.msra.mxu0 %v78
    %1598 = vmatprep.subr.mxu0 %v82
    %1599 = vmatpush1.msra.mxu0 %v81
    %1600 = vmatprep.subr.mxu0 %v85
    %1601 = vmatpush1.msra.mxu0 %v84
    %1602 = vmatprep.subr.mxu0 %v88
    %1603 = vmatpush1.msra.mxu0 %v87
    %1604 = vmatprep.subr.mxu0 %v91
    %1605 = vmatpush1.msra.mxu0 %v90
    %1606 = vmatprep.subr.mxu0 0.0
    %1607 = vmatpush1.msra.mxu0 0.0
    %1608 = vmatprep.subr.mxu0 0.0
    %1609 = vmatpush1.msra.mxu0 0.0
    %1610 = vmatprep.subr.mxu0 0.0
    %1611 = vmatpush1.msra.mxu0 0.0
    %1612 = vmatprep.subr.mxu0 0.0
    %1613 = vmatpush1.msra.mxu0 0.0
    %1614 = vmatprep.subr.mxu0 0.0
    %1615 = vmatpush1.msra.mxu0 0.0
    %1616 = vmatprep.subr.mxu0 0.0
    %1617 = vmatpush1.msra.mxu0 0.0
    %1618 = vmatprep.subr.mxu0 0.0
    %1619 = vmatpush1.msra.mxu0 0.0
    %1620 = vmatprep.subr.mxu0 0.0
    %1621 = vmatpush1.msra.mxu0 0.0
    %1622 = vmatprep.subr.mxu0 0.0
    %1623 = vmatpush1.msra.mxu0 0.0
    %1624 = vmatprep.subr.mxu0 0.0
    %1625 = vmatpush1.msra.mxu0 0.0
    %1626 = vmatprep.subr.mxu0 0.0
    %1627 = vmatpush1.msra.mxu0 0.0
    %1628 = vmatprep.subr.mxu0 0.0
    %1629 = vmatpush1.msra.mxu0 0.0
    %1630 = vmatprep.subr.mxu0 0.0
    %1631 = vmatpush1.msra.mxu0 0.0
    %1632 = vmatprep.subr.mxu0 0.0
    %1633 = vmatpush1.msra.mxu0 0.0
    %1634 = vmatprep.subr.mxu0 0.0
    %1635 = vmatpush1.msra.mxu0 0.0
    %1636 = vmatprep.subr.mxu0 0.0
    %1637 = vmatpush1.msra.mxu0 0.0
    %1638 = vmatprep.mubr.f32.mxu0 0.0
    %1639 = vmatmul.mubr.f32.gmra.mrb[0].mxu0 %v1572
    %v1640 = vpop.f32.mrb[0].mxu0
    %v1641 = vadd.f32 0.0, %v1640
    %v1642 = vpop.f32.mrb[0].mxu0
    %v1643 = vadd.f32 0.0, %v1642
    %1644 = vdwg.mxu0
    %1645 = vmatprep.subr.mxu0 0.0
    %1646 = vmatpush1.msra.mxu0 %v47
    %1647 = vmatprep.subr.mxu0 0.0
    %1648 = vmatpush1.msra.mxu0 %v50
    %1649 = vmatprep.subr.mxu0 0.0
    %1650 = vmatpush1.msra.mxu0 %v53
    %1651 = vmatprep.subr.mxu0 0.0
    %1652 = vmatpush1.msra.mxu0 %v56
    %1653 = vmatprep.subr.mxu0 0.0
    %1654 = vmatpush1.msra.mxu0 %v59
    %1655 = vmatprep.subr.mxu0 0.0
    %1656 = vmatpush1.msra.mxu0 %v62
    %1657 = vmatprep.subr.mxu0 0.0
    %1658 = vmatpush1.msra.mxu0 %v65
    %1659 = vmatprep.subr.mxu0 0.0
    %1660 = vmatpush1.msra.mxu0 %v68
    %1661 = vmatprep.subr.mxu0 0.0
    %1662 = vmatpush1.msra.mxu0 %v71
    %1663 = vmatprep.subr.mxu0 0.0
    %1664 = vmatpush1.msra.mxu0 %v74
    %1665 = vmatprep.subr.mxu0 0.0
    %1666 = vmatpush1.msra.mxu0 %v77
    %1667 = vmatprep.subr.mxu0 0.0
    %1668 = vmatpush1.msra.mxu0 %v80
    %1669 = vmatprep.subr.mxu0 0.0
    %1670 = vmatpush1.msra.mxu0 %v83
    %1671 = vmatprep.subr.mxu0 0.0
    %1672 = vmatpush1.msra.mxu0 %v86
    %1673 = vmatprep.subr.mxu0 0.0
    %1674 = vmatpush1.msra.mxu0 %v89
    %1675 = vmatprep.subr.mxu0 0.0
    %1676 = vmatpush1.msra.mxu0 %v92
    %1677 = vmatprep.subr.mxu0 0.0
    %1678 = vmatpush1.msra.mxu0 0.0
    %1679 = vmatprep.subr.mxu0 0.0
    %1680 = vmatpush1.msra.mxu0 0.0
    %1681 = vmatprep.subr.mxu0 0.0
    %1682 = vmatpush1.msra.mxu0 0.0
    %1683 = vmatprep.subr.mxu0 0.0
    %1684 = vmatpush1.msra.mxu0 0.0
    %1685 = vmatprep.subr.mxu0 0.0
    %1686 = vmatpush1.msra.mxu0 0.0
    %1687 = vmatprep.subr.mxu0 0.0
    %1688 = vmatpush1.msra.mxu0 0.0
    %1689 = vmatprep.subr.mxu0 0.0
    %1690 = vmatpush1.msra.mxu0 0.0
    %1691 = vmatprep.subr.mxu0 0.0
    %1692 = vmatpush1.msra.mxu0 0.0
    %1693 = vmatprep.subr.mxu0 0.0
    %1694 = vmatpush1.msra.mxu0 0.0
    %1695 = vmatprep.subr.mxu0 0.0
    %1696 = vmatpush1.msra.mxu0 0.0
    %1697 = vmatprep.subr.mxu0 0.0
    %1698 = vmatpush1.msra.mxu0 0.0
    %1699 = vmatprep.subr.mxu0 0.0
    %1700 = vmatpush1.msra.mxu0 0.0
    %1701 = vmatprep.subr.mxu0 0.0
    %1702 = vmatpush1.msra.mxu0 0.0
    %1703 = vmatprep.subr.mxu0 0.0
    %1704 = vmatpush1.msra.mxu0 0.0
    %1705 = vmatprep.subr.mxu0 0.0
    %1706 = vmatpush1.msra.mxu0 0.0
    %1707 = vmatprep.subr.mxu0 0.0
    %1708 = vmatpush1.msra.mxu0 0.0
    %1709 = vmatprep.mubr.f32.mxu0 0.0
    %1710 = vmatmul.mubr.f32.gmra.mrb[0].mxu0 %v1572
    %v1711 = vpop.f32.mrb[0].mxu0
    %v1712 = vadd.f32 0.0, %v1711
    %v1713 = vpop.f32.mrb[0].mxu0
    %1714 = vdwg.mxu0
    %v1716 = vrot.slane %v1641, 2
    %v1717 = vrot.slane %v1641, 3
    %v1720 = vadd.f32 %v211, %v1716
    %v1721 = vadd.f32 %v217, %v1717
    %v1722 = vxor.u32 %v1720, 2147483648
    %v1723 = vxor.u32 %v1721, 2147483648
    %v1724 = vmul.f32 %v1722, 1.442695
    %v1725 = vpow.pop %v1724
    %v1726 = vmul.f32 %v1723, 1.442695
    %v1727 = vpow.pop %v1726
    %v1728 = vadd.f32 %v1725, 1.0
    %v1729 = vadd.f32 %v1727, 1.0
    %v1730 = vrcp.pop %v1728
    %v1731 = vmul.f32 1.0, %v1730
    %v1732 = vrcp.pop %v1729
    %v1733 = vmul.f32 1.0, %v1732
    %v1735 = vrot.slane %v1643, 2
    %v1736 = vrot.slane %v1643, 3
    %v1739 = vadd.f32 %v213, %v1735
    %v1740 = vadd.f32 %v219, %v1736
    %v1741 = vxor.u32 %v1739, 2147483648
    %v1742 = vxor.u32 %v1740, 2147483648
    %v1743 = vmul.f32 %v1741, 1.442695
    %v1744 = vpow.pop %v1743
    %v1745 = vmul.f32 %v1742, 1.442695
    %v1746 = vpow.pop %v1745
    %v1747 = vadd.f32 %v1744, 1.0
    %v1748 = vadd.f32 %v1746, 1.0
    %v1749 = vrcp.pop %v1747
    %v1750 = vmul.f32 1.0, %v1749
    %v1751 = vrcp.pop %v1748
    %v1752 = vmul.f32 1.0, %v1751
    %v1753 = vadd.f32 %v1712, %v301
    %v1755 = vrot.slane %v1753, 2
    %v1756 = vrot.slane %v1753, 3
    %v1759 = vmul.f32 %v1731, %v1755
    %v1760 = vmul.f32 %v1733, %v1756
    %v1761 = vadd.f32 %v288, %v1759
    %v1762 = vadd.f32 %v293, %v1760
    %v1763 = vtanh.pop %v1761
    %v1764 = vtanh.pop %v1762
    %v1767 = vrot.slane %v1763, 1
    %v1768 = vrot.slane %v1764, 1
    %v1771 = vsub.f32 %v1566, %v1767
    %v1772 = vsub.f32 %v1567, %v1768
    %v1775 = vrot.slane %v1771, 7
    %v1776 = vrot.slane %v1772, 7
    %v1779 = vmul.f32 %v1750, %v1775
    %v1780 = vmul.f32 %v1752, %v1776
    %v1781 = vadd.f32 %v1763, %v1779
    %v1782 = vadd.f32 %v1764, %v1780
    %v1785 = vrot.slane %v1781, 6
    %v1786 = vrot.slane %v1782, 5
    %v1787 = vsel %vm500, %v1786, %v1785
    %1789 = vmatprep.subr.mxu0 %v46
    %1790 = vmatpush1.msra.mxu0 %v45
    %1791 = vmatprep.subr.mxu0 %v49
    %1792 = vmatpush1.msra.mxu0 %v48
    %1793 = vmatprep.subr.mxu0 %v52
    %1794 = vmatpush1.msra.mxu0 %v51
    %1795 = vmatprep.subr.mxu0 %v55
    %1796 = vmatpush1.msra.mxu0 %v54
    %1797 = vmatprep.subr.mxu0 %v58
    %1798 = vmatpush1.msra.mxu0 %v57
    %1799 = vmatprep.subr.mxu0 %v61
    %1800 = vmatpush1.msra.mxu0 %v60
    %1801 = vmatprep.subr.mxu0 %v64
    %1802 = vmatpush1.msra.mxu0 %v63
    %1803 = vmatprep.subr.mxu0 %v67
    %1804 = vmatpush1.msra.mxu0 %v66
    %1805 = vmatprep.subr.mxu0 %v70
    %1806 = vmatpush1.msra.mxu0 %v69
    %1807 = vmatprep.subr.mxu0 %v73
    %1808 = vmatpush1.msra.mxu0 %v72
    %1809 = vmatprep.subr.mxu0 %v76
    %1810 = vmatpush1.msra.mxu0 %v75
    %1811 = vmatprep.subr.mxu0 %v79
    %1812 = vmatpush1.msra.mxu0 %v78
    %1813 = vmatprep.subr.mxu0 %v82
    %1814 = vmatpush1.msra.mxu0 %v81
    %1815 = vmatprep.subr.mxu0 %v85
    %1816 = vmatpush1.msra.mxu0 %v84
    %1817 = vmatprep.subr.mxu0 %v88
    %1818 = vmatpush1.msra.mxu0 %v87
    %1819 = vmatprep.subr.mxu0 %v91
    %1820 = vmatpush1.msra.mxu0 %v90
    %1821 = vmatprep.subr.mxu0 0.0
    %1822 = vmatpush1.msra.mxu0 0.0
    %1823 = vmatprep.subr.mxu0 0.0
    %1824 = vmatpush1.msra.mxu0 0.0
    %1825 = vmatprep.subr.mxu0 0.0
    %1826 = vmatpush1.msra.mxu0 0.0
    %1827 = vmatprep.subr.mxu0 0.0
    %1828 = vmatpush1.msra.mxu0 0.0
    %1829 = vmatprep.subr.mxu0 0.0
    %1830 = vmatpush1.msra.mxu0 0.0
    %1831 = vmatprep.subr.mxu0 0.0
    %1832 = vmatpush1.msra.mxu0 0.0
    %1833 = vmatprep.subr.mxu0 0.0
    %1834 = vmatpush1.msra.mxu0 0.0
    %1835 = vmatprep.subr.mxu0 0.0
    %1836 = vmatpush1.msra.mxu0 0.0
    %1837 = vmatprep.subr.mxu0 0.0
    %1838 = vmatpush1.msra.mxu0 0.0
    %1839 = vmatprep.subr.mxu0 0.0
    %1840 = vmatpush1.msra.mxu0 0.0
    %1841 = vmatprep.subr.mxu0 0.0
    %1842 = vmatpush1.msra.mxu0 0.0
    %1843 = vmatprep.subr.mxu0 0.0
    %1844 = vmatpush1.msra.mxu0 0.0
    %1845 = vmatprep.subr.mxu0 0.0
    %1846 = vmatpush1.msra.mxu0 0.0
    %1847 = vmatprep.subr.mxu0 0.0
    %1848 = vmatpush1.msra.mxu0 0.0
    %1849 = vmatprep.subr.mxu0 0.0
    %1850 = vmatpush1.msra.mxu0 0.0
    %1851 = vmatprep.subr.mxu0 0.0
    %1852 = vmatpush1.msra.mxu0 0.0
    %1853 = vmatprep.mubr.f32.mxu0 0.0
    %1854 = vmatmul.mubr.f32.gmra.mrb[0].mxu0 %v1787
    %v1855 = vpop.f32.mrb[0].mxu0
    %v1856 = vadd.f32 0.0, %v1855
    %v1857 = vpop.f32.mrb[0].mxu0
    %v1858 = vadd.f32 0.0, %v1857
    %1859 = vdwg.mxu0
    %1860 = vmatprep.subr.mxu0 0.0
    %1861 = vmatpush1.msra.mxu0 %v47
    %1862 = vmatprep.subr.mxu0 0.0
    %1863 = vmatpush1.msra.mxu0 %v50
    %1864 = vmatprep.subr.mxu0 0.0
    %1865 = vmatpush1.msra.mxu0 %v53
    %1866 = vmatprep.subr.mxu0 0.0
    %1867 = vmatpush1.msra.mxu0 %v56
    %1868 = vmatprep.subr.mxu0 0.0
    %1869 = vmatpush1.msra.mxu0 %v59
    %1870 = vmatprep.subr.mxu0 0.0
    %1871 = vmatpush1.msra.mxu0 %v62
    %1872 = vmatprep.subr.mxu0 0.0
    %1873 = vmatpush1.msra.mxu0 %v65
    %1874 = vmatprep.subr.mxu0 0.0
    %1875 = vmatpush1.msra.mxu0 %v68
    %1876 = vmatprep.subr.mxu0 0.0
    %1877 = vmatpush1.msra.mxu0 %v71
    %1878 = vmatprep.subr.mxu0 0.0
    %1879 = vmatpush1.msra.mxu0 %v74
    %1880 = vmatprep.subr.mxu0 0.0
    %1881 = vmatpush1.msra.mxu0 %v77
    %1882 = vmatprep.subr.mxu0 0.0
    %1883 = vmatpush1.msra.mxu0 %v80
    %1884 = vmatprep.subr.mxu0 0.0
    %1885 = vmatpush1.msra.mxu0 %v83
    %1886 = vmatprep.subr.mxu0 0.0
    %1887 = vmatpush1.msra.mxu0 %v86
    %1888 = vmatprep.subr.mxu0 0.0
    %1889 = vmatpush1.msra.mxu0 %v89
    %1890 = vmatprep.subr.mxu0 0.0
    %1891 = vmatpush1.msra.mxu0 %v92
    %1892 = vmatprep.subr.mxu0 0.0
    %1893 = vmatpush1.msra.mxu0 0.0
    %1894 = vmatprep.subr.mxu0 0.0
    %1895 = vmatpush1.msra.mxu0 0.0
    %1896 = vmatprep.subr.mxu0 0.0
    %1897 = vmatpush1.msra.mxu0 0.0
    %1898 = vmatprep.subr.mxu0 0.0
    %1899 = vmatpush1.msra.mxu0 0.0
    %1900 = vmatprep.subr.mxu0 0.0
    %1901 = vmatpush1.msra.mxu0 0.0
    %1902 = vmatprep.subr.mxu0 0.0
    %1903 = vmatpush1.msra.mxu0 0.0
    %1904 = vmatprep.subr.mxu0 0.0
    %1905 = vmatpush1.msra.mxu0 0.0
    %1906 = vmatprep.subr.mxu0 0.0
    %1907 = vmatpush1.msra.mxu0 0.0
    %1908 = vmatprep.subr.mxu0 0.0
    %1909 = vmatpush1.msra.mxu0 0.0
    %1910 = vmatprep.subr.mxu0 0.0
    %1911 = vmatpush1.msra.mxu0 0.0
    %1912 = vmatprep.subr.mxu0 0.0
    %1913 = vmatpush1.msra.mxu0 0.0
    %1914 = vmatprep.subr.mxu0 0.0
    %1915 = vmatpush1.msra.mxu0 0.0
    %1916 = vmatprep.subr.mxu0 0.0
    %1917 = vmatpush1.msra.mxu0 0.0
    %1918 = vmatprep.subr.mxu0 0.0
    %1919 = vmatpush1.msra.mxu0 0.0
    %1920 = vmatprep.subr.mxu0 0.0
    %1921 = vmatpush1.msra.mxu0 0.0
    %1922 = vmatprep.subr.mxu0 0.0
    %1923 = vmatpush1.msra.mxu0 0.0
    %1924 = vmatprep.mubr.f32.mxu0 0.0
    %1925 = vmatmul.mubr.f32.gmra.mrb[0].mxu0 %v1787
    %v1926 = vpop.f32.mrb[0].mxu0
    %v1927 = vadd.f32 0.0, %v1926
    %v1928 = vpop.f32.mrb[0].mxu0
    %1929 = vdwg.mxu0
    %v1931 = vrot.slane %v1856, 1
    %v1932 = vrot.slane %v1856, 2
    %v1935 = vadd.f32 %v211, %v1931
    %v1936 = vadd.f32 %v217, %v1932
    %v1937 = vxor.u32 %v1935, 2147483648
    %v1938 = vxor.u32 %v1936, 2147483648
    %v1939 = vmul.f32 %v1937, 1.442695
    %v1940 = vpow.pop %v1939
    %v1941 = vmul.f32 %v1938, 1.442695
    %v1942 = vpow.pop %v1941
    %v1943 = vadd.f32 %v1940, 1.0
    %v1944 = vadd.f32 %v1942, 1.0
    %v1945 = vrcp.pop %v1943
    %v1946 = vmul.f32 1.0, %v1945
    %v1947 = vrcp.pop %v1944
    %v1948 = vmul.f32 1.0, %v1947
    %v1950 = vrot.slane %v1858, 1
    %v1951 = vrot.slane %v1858, 2
    %v1954 = vadd.f32 %v213, %v1950
    %v1955 = vadd.f32 %v219, %v1951
    %v1956 = vxor.u32 %v1954, 2147483648
    %v1957 = vxor.u32 %v1955, 2147483648
    %v1958 = vmul.f32 %v1956, 1.442695
    %v1959 = vpow.pop %v1958
    %v1960 = vmul.f32 %v1957, 1.442695
    %v1961 = vpow.pop %v1960
    %v1962 = vadd.f32 %v1959, 1.0
    %v1963 = vadd.f32 %v1961, 1.0
    %v1964 = vrcp.pop %v1962
    %v1965 = vmul.f32 1.0, %v1964
    %v1966 = vrcp.pop %v1963
    %v1967 = vmul.f32 1.0, %v1966
    %v1968 = vadd.f32 %v1927, %v301
    %v1970 = vrot.slane %v1968, 1
    %v1971 = vrot.slane %v1968, 2
    %v1974 = vmul.f32 %v1946, %v1970
    %v1975 = vmul.f32 %v1948, %v1971
    %v1976 = vadd.f32 %v288, %v1974
    %v1977 = vadd.f32 %v293, %v1975
    %v1978 = vtanh.pop %v1976
    %v1979 = vtanh.pop %v1977
    %v1982 = vrot.slane %v1978, 1
    %v1983 = vrot.slane %v1979, 1
    %v1986 = vsub.f32 %v1781, %v1982
    %v1987 = vsub.f32 %v1782, %v1983
    %v1990 = vrot.slane %v1986, 7
    %v1991 = vrot.slane %v1987, 7
    %v1994 = vmul.f32 %v1965, %v1990
    %v1995 = vmul.f32 %v1967, %v1991
    %v1996 = vadd.f32 %v1978, %v1994
    %v1997 = vadd.f32 %v1979, %v1995
    %vm1998 = vcmask 1040384
    %v1999 = vsel %vm1998, %v495, %v707
    %v2000 = vsel %vm1998, %v496, %v708
    %vm2001 = vcmask 1041408
    %v2002 = vsel %vm2001, %v1999, %v921
    %v2003 = vsel %vm2001, %v2000, %v922
    %vm2004 = vcmask 1042432
    %v2005 = vsel %vm2004, %v2002, %v1136
    %v2006 = vsel %vm2004, %v2003, %v1137
    %vm2007 = vcmask 1043456
    %v2008 = vsel %vm2007, %v2005, %v1351
    %v2009 = vsel %vm2007, %v2006, %v1352
    %vm2010 = vcmask 1044480
    %v2011 = vsel %vm2010, %v2008, %v1566
    %v2012 = vsel %vm2010, %v2009, %v1567
    %v2013 = vsel %vm134, %v2011, %v1781
    %v2014 = vsel %vm134, %v2012, %v1782
    %vm2015 = vcmask 1046528
    %v2016 = vsel %vm2015, %v2013, %v1996
    %v2017 = vsel %vm2015, %v2014, %v1997
    %v2019 = vlaneseq
    %v2020 = vshrl.u32 %v2019, 7
    %v2021 = vsub.s32 0, %v2020
    %v2022 = vrot.slane %v110, %v2021
    %2024 = vmatprep.subr.mxu0 0.0
    %2025 = vmatpush1.msra.mxu0 %v94
    %2026 = vmatprep.subr.mxu0 0.0
    %2027 = vmatpush1.msra.mxu0 %v95
    %2028 = vmatprep.subr.mxu0 0.0
    %2029 = vmatpush1.msra.mxu0 %v96
    %2030 = vmatprep.subr.mxu0 0.0
    %2031 = vmatpush1.msra.mxu0 %v97
    %2032 = vmatprep.subr.mxu0 0.0
    %2033 = vmatpush1.msra.mxu0 %v98
    %2034 = vmatprep.subr.mxu0 0.0
    %2035 = vmatpush1.msra.mxu0 %v99
    %2036 = vmatprep.subr.mxu0 0.0
    %2037 = vmatpush1.msra.mxu0 %v100
    %2038 = vmatprep.subr.mxu0 0.0
    %2039 = vmatpush1.msra.mxu0 %v101
    %2040 = vmatprep.subr.mxu0 0.0
    %2041 = vmatpush1.msra.mxu0 %v102
    %2042 = vmatprep.subr.mxu0 0.0
    %2043 = vmatpush1.msra.mxu0 %v103
    %2044 = vmatprep.subr.mxu0 0.0
    %2045 = vmatpush1.msra.mxu0 %v104
    %2046 = vmatprep.subr.mxu0 0.0
    %2047 = vmatpush1.msra.mxu0 %v105
    %2048 = vmatprep.subr.mxu0 0.0
    %2049 = vmatpush1.msra.mxu0 %v106
    %2050 = vmatprep.subr.mxu0 0.0
    %2051 = vmatpush1.msra.mxu0 %v107
    %2052 = vmatprep.subr.mxu0 0.0
    %2053 = vmatpush1.msra.mxu0 %v108
    %2054 = vmatprep.subr.mxu0 0.0
    %2055 = vmatpush1.msra.mxu0 %v109
    %2056 = vmatprep.subr.mxu0 0.0
    %2057 = vmatpush1.msra.mxu0 0.0
    %2058 = vmatprep.subr.mxu0 0.0
    %2059 = vmatpush1.msra.mxu0 0.0
    %2060 = vmatprep.subr.mxu0 0.0
    %2061 = vmatpush1.msra.mxu0 0.0
    %2062 = vmatprep.subr.mxu0 0.0
    %2063 = vmatpush1.msra.mxu0 0.0
    %2064 = vmatprep.subr.mxu0 0.0
    %2065 = vmatpush1.msra.mxu0 0.0
    %2066 = vmatprep.subr.mxu0 0.0
    %2067 = vmatpush1.msra.mxu0 0.0
    %2068 = vmatprep.subr.mxu0 0.0
    %2069 = vmatpush1.msra.mxu0 0.0
    %2070 = vmatprep.subr.mxu0 0.0
    %2071 = vmatpush1.msra.mxu0 0.0
    %2072 = vmatprep.subr.mxu0 0.0
    %2073 = vmatpush1.msra.mxu0 0.0
    %2074 = vmatprep.subr.mxu0 0.0
    %2075 = vmatpush1.msra.mxu0 0.0
    %2076 = vmatprep.subr.mxu0 0.0
    %2077 = vmatpush1.msra.mxu0 0.0
    %2078 = vmatprep.subr.mxu0 0.0
    %2079 = vmatpush1.msra.mxu0 0.0
    %2080 = vmatprep.subr.mxu0 0.0
    %2081 = vmatpush1.msra.mxu0 0.0
    %2082 = vmatprep.subr.mxu0 0.0
    %2083 = vmatpush1.msra.mxu0 0.0
    %2084 = vmatprep.subr.mxu0 0.0
    %2085 = vmatpush1.msra.mxu0 0.0
    %2086 = vmatprep.subr.mxu0 0.0
    %2087 = vmatpush1.msra.mxu0 0.0
    %2088 = vmatprep.mubr.f32.mxu0 0.0
    %2089 = vmatmul.mubr.f32.gmra.mrb[0].mxu0 %v2016
    %v2090 = vpop.f32.mrb[0].mxu0
    %v2091 = vadd.f32 %v2022, %v2090
    %v2092 = vpop.f32.mrb[0].mxu0
    %2093 = vmatprep.mubr.f32.mxu0 0.0
    %2094 = vmatmul.mubr.f32.gmra.mrb[0].mxu0 %v2017
    %v2095 = vpop.f32.mrb[0].mxu0
    %v2096 = vadd.f32 %v2022, %v2095
    %v2097 = vpop.f32.mrb[0].mxu0
    %2098 = vdwg.mxu0
    %vm2099 = vcmask 23552
    %2100 = vst.msk [vmem:[%s7] sm:$0xff] %vm2099, %v2091
    %2101 = vst.msk [vmem:[%s7 + $0x8] sm:$0xff] %vm2099, %v2096
    // Predicated region
    $region34: #{tpu_custom_call.1} parent=1 // pred_check
      _
    $region35: #{tpu_custom_call.1} parent=1 // pred_check_branch
      %2103 = sbr.rel (0) target = $region37
    $region36: #{tpu_custom_call.1} parent=1 // pred_region
      _
    $region37: #{tpu_custom_call.1} parent=1 // pred_fallthru
      _
    // Predicated region
    $region38: #{tpu_custom_call.1} parent=1 // pred_check
      _
    $region39: #{tpu_custom_call.1} parent=1 // pred_check_branch
      %2105 = sbr.rel (0) target = $region41
    $region40: #{tpu_custom_call.1} parent=1 // pred_region
      _
    $region41: #{tpu_custom_call.1} parent=1 // pred_fallthru
      _
    %2106 = vsyncpa [#allocation3], 1

</llo_original>
